<compile_context>
chip_gen: v7x
topology: tpu7x:2x2x1
jax: 0.10.0
libtpu: 0.0.40
codegen_flags: <defaults>
</compile_context>

<pallas_src>
import math

import jax
import jax.numpy as jnp
from jax.experimental import pallas as pl
from jax.experimental.pallas import tpu as pltpu

LANE = 128      # TPU lane width; all feature dims are padded to a multiple of this


def _round_up(x, m):
    return (x + m - 1) // m * m


# --------------------------------------------------------------------------
# Pallas kernels
# --------------------------------------------------------------------------
def bigru_layer_kernel(gi_ref, len_ref, whh_ref, bhh_ref, out_ref, hT_ref, h_scr):
    """One grid step == one (direction, time-chunk) tile of the GRU recurrence.

    Grid = (2, NT): axis 0 = direction (fwd/bwd, "parallel"), axis 1 = time chunk
    ("arbitrary", hidden state carried in h_scr).  The backward direction is
    realized purely through indexing: its index_map visits time chunks in reverse
    order and the local loop walks the chunk backwards.

    gi_ref : (Tc, B, 3Hp)  precomputed x @ W_ih + b_ih for this direction & chunk
    len_ref: (B, 1)        float32 sequence lengths
    whh_ref: (Hp, 3Hp)     recurrent weights for this direction (resident over chunks)
    bhh_ref: (1, 3Hp)      recurrent bias
    out_ref: (Tc, B, Hp)   per-timestep hidden (this direction's lane-dense column slab)
    hT_ref : (1, B, Hp)    final hidden state of this direction
    h_scr  : (B, Hp) VMEM  hidden state carried across time chunks
    """
    d = pl.program_id(0)            # 0 = forward, 1 = backward
    c = pl.program_id(1)            # chunk counter (bwd visits chunks in reverse)
    nc = pl.num_programs(1)
    Tc = out_ref.shape[0]
    Hp = h_scr.shape[1]

    @pl.when(c == 0)
    def _():                         # h0 = 0 at the start of each direction
        h_scr[...] = jnp.zeros_like(h_scr)

    lens = len_ref[...]              # (B, 1) f32
    bhh = bhh_ref[...]               # (1, 3Hp), tiny -> hoisted

    # Scalar hoists: no per-step d==0 select inside the loop.
    sign = 1 - 2 * d                            # +1 fwd, -1 bwd
    local0 = d * (Tc - 1)                       # first local index inside the chunk
    t_base = (d * (nc - 1) + sign * c) * Tc     # original-time offset of this chunk

    def step(j, h_prev):
        local = local0 + sign * j                                    # in-chunk time index
        gi = gi_ref[local]                                            # (B, 3Hp)
        gh = jnp.dot(h_prev, whh_ref[...],
                     preferred_element_type=jnp.float32) + bhh        # (B, 3Hp)
        # PyTorch gate order r, z, n; slices are 128-lane aligned (Hp % 128 == 0).
        r = jax.nn.sigmoid(gi[:, 0:Hp] + gh[:, 0:Hp])
        z = jax.nn.sigmoid(gi[:, Hp:2 * Hp] + gh[:, Hp:2 * Hp])
        n = jnp.tanh(gi[:, 2 * Hp:3 * Hp] + r * gh[:, 2 * Hp:3 * Hp])
        h_new = n + z * (h_prev - n)                                  # = (1-z)*n + z*h_prev
        # pack_padded_sequence semantics: hidden frozen past each sequence length.
        m = ((t_base + local).astype(jnp.float32) < lens).astype(jnp.float32)   # (B, 1)
        h_cur = h_prev + m * (h_new - h_prev)
        out_ref[local] = (m * h_new).astype(out_ref.dtype)            # == m*h_cur (m in {0,1})
        return h_cur

    # Hidden state stays in vregs across the chunk; VMEM scratch touched once/chunk.
    h_last = jax.lax.fori_loop(0, Tc, step, h_scr[...], unroll=min(8, Tc))
    h_scr[...] = h_last
    hT_ref[0] = h_last.astype(hT_ref.dtype)     # last chunk of each direction wins


def make_attn_kernel(n_seg):
    """Attention pooling over n_seg per-layer slabs (no pre-concat of the slabs)."""

    def attn_kernel(*refs):
        x_refs = refs[0:n_seg]                     # each (T, Bb, Dseg_i), lane-dense
        len_ref = refs[n_seg]                      # (1, Bb, 1)
        w_refs = refs[n_seg + 1:2 * n_seg + 1]     # each (1, 1, Dseg_i)
        b_ref = refs[2 * n_seg + 1]                # (1, 1)
        enc_refs = refs[2 * n_seg + 2:]            # each (Bb, Dseg_i)

        # score: tanh(sum_seg <x_seg, w_seg> + b)  (VPU multiply + XLU lane reduce)
        acc = None
        for x_ref, w_ref in zip(x_refs, w_refs):
            contrib = jnp.sum(x_ref[...] * w_ref[...], axis=-1, keepdims=True)
            acc = contrib if acc is None else acc + contrib
        s = jnp.tanh(acc + b_ref[...])                                  # (T, Bb, 1)

        # Fused masked softmax: softmax-over-all-T + mask + L1-renorm collapses to a
        # single masked normalization (mathematically identical); one exact reciprocal.
        t_idx = jax.lax.broadcasted_iota(jnp.int32, s.shape, 0).astype(jnp.float32)
        m = (t_idx < len_ref[...]).astype(jnp.float32)
        e = jnp.exp(s - jnp.max(s, axis=0, keepdims=True)) * m
        denom = jnp.maximum(jnp.sum(e, axis=0, keepdims=True), 1e-30)   # len-0 guard
        p = e * pl.reciprocal(denom, approx=False)

        # weighted sum over time, written per segment (lane-dense outputs)
        for x_ref, enc_ref in zip(x_refs, enc_refs):
            enc_ref[...] = jnp.sum(p * x_ref[...], axis=0).astype(enc_ref.dtype)

    return attn_kernel


# --------------------------------------------------------------------------
# Wrappers around pallas_call
# --------------------------------------------------------------------------
def _pick_time_chunk(T, B, Hp, budget_bytes=16 * 1024 * 1024):
    """Largest divisor of T whose double-buffered gi+out chunks fit the budget."""
    per_step = 2 * B * (3 * Hp + Hp) * 4           # 2x double-buffered streams, f32
    tc = max(1, min(T, budget_bytes // max(per_step, 1)))
    while T % tc:                                   # TODO(synk): pad T instead for huge prime T
        tc -= 1
    return tc


def bigru_layer(x, lens_col, lp, time_chunk=None):
    """One bidirectional GRU layer.

    x        : (T, B, Din_pad) time-major (Din_pad = word_emb_dim for layer 0,
               2*Hp_prev afterwards; padded rows of W_ih are zero so it is exact)
    lens_col : (B, 1) float32 lengths
    lp       : padded/fused layer params (w_ih (Din_pad,6Hp), b_ih (1,6Hp),
               w_hh (Hp,6Hp), b_hh (1,6Hp))
    returns  : out (T, B, 2Hp)  [fwd in cols 0:Hp, bwd in cols Hp:2Hp],
               hT  (2, B, Hp)
    """
    T, B, Din = x.shape
    Hp = lp['Hp']

    # Hoisted input projection: ONE big MXU matmul for both directions and all T.
    gi_all = (x.reshape(T * B, Din) @ lp['w_ih'] + lp['b_ih']).reshape(T, B, 6 * Hp)

    Tc = _pick_time_chunk(T, B, Hp) if time_chunk is None else time_chunk
    assert T % Tc == 0, (T, Tc)
    NT = T // Tc

    def t_blk(d, c):                        # bwd walks time chunks in reverse order
        return d * (NT - 1) + (1 - 2 * d) * c

    # Explicit VMEM budget (avoids silently relying on the small scoped default).
    stream_bytes = 2 * (Tc * B * 3 * Hp + Tc * B * Hp) * 4
    weight_bytes = 2 * (Hp * 3 * Hp + 3 * Hp) * 4
    misc_bytes = (3 * B * Hp + B) * 4
    vmem_limit = int(min(64 * 2 ** 20,
                         max(16 * 2 ** 20, 2 * (stream_bytes + weight_bytes + misc_bytes))))

    cost = pl.CostEstimate(
        flops=int(2 * 2 * T * B * Hp * 3 * Hp),            # recurrent matmuls, both dirs
        transcendentals=int(2 * T * B * 3 * Hp),            # sigmoid x2 + tanh per step
        bytes_accessed=int((T * B * 6 * Hp + T * B * 2 * Hp + 2 * Hp * 3 * Hp) * 4),
    )

    out, hT = pl.pallas_call(
        bigru_layer_kernel,
        out_shape=(jax.ShapeDtypeStruct((T, B, 2 * Hp), jnp.float32),
                   jax.ShapeDtypeStruct((2, B, Hp), jnp.float32)),
        grid_spec=pltpu.PrefetchScalarGridSpec(
            num_scalar_prefetch=0,
            grid=(2, NT),                    # (direction, time chunk)
            in_specs=[
                # fused gi: column block (3Hp wide) selected by direction index
                pl.BlockSpec((Tc, B, 3 * Hp), lambda d, c: (t_blk(d, c), 0, d)),
                pl.BlockSpec((B, 1), lambda d, c: (0, 0)),
                # W_hh / b_hh resident across the time axis (index_map ignores c)
                pl.BlockSpec((Hp, 3 * Hp), lambda d, c: (0, d)),
                pl.BlockSpec((1, 3 * Hp), lambda d, c: (0, d)),
            ],
            out_specs=(
                # fwd -> column block 0, bwd -> column block 1 (no concat afterwards)
                pl.BlockSpec((Tc, B, Hp), lambda d, c: (t_blk(d, c), 0, d)),
                pl.BlockSpec((1, B, Hp), lambda d, c: (d, 0, 0)),
            ),
            scratch_shapes=[pltpu.VMEM((B, Hp), jnp.float32)],
        ),
        compiler_params=pltpu.CompilerParams(
            dimension_semantics=("parallel", "arbitrary"),
            vmem_limit_bytes=vmem_limit,
        ),
        cost_estimate=cost,
    )(gi_all, lens_col, lp['w_hh'], lp['b_hh'])
    return out, hT


def attention_pool(layer_outs, lens_col, w_segs, attn_b, b_blk=None):
    """Attention pooling over per-layer slabs (time-major, no transpose/concat)."""
    T, B, _ = layer_outs[0].shape
    n = len(layer_outs)
    if b_blk is None:
        b_blk = B        # whole (small) batch per grid step
        # TODO(synk): for realistic T*B*D, derive b_blk from a VMEM budget (halve on v7x).
    lens3 = lens_col.reshape(1, B, 1)
    d_segs = [int(o.shape[2]) for o in layer_outs]
    d_tot = sum(d_segs)

    in_specs = (
        [pl.BlockSpec((T, b_blk, ds), lambda i: (0, i, 0)) for ds in d_segs]
        + [pl.BlockSpec((1, b_blk, 1), lambda i: (0, i, 0))]
        + [pl.BlockSpec((1, 1, ds), lambda i: (0, 0, 0)) for ds in d_segs]
        + [pl.BlockSpec((1, 1), lambda i: (0, 0))]
    )
    out_specs = tuple(pl.BlockSpec((b_blk, ds), lambda i: (i, 0)) for ds in d_segs)
    out_shape = tuple(jax.ShapeDtypeStruct((B, ds), jnp.float32) for ds in d_segs)

    vmem_limit = int(min(64 * 2 ** 20, max(16 * 2 ** 20, 4 * T * b_blk * d_tot * 4)))
    cost = pl.CostEstimate(
        flops=int(4 * T * B * d_tot),
        transcendentals=int(2 * T * B),
        bytes_accessed=int((T * B * d_tot + B * d_tot) * 4),
    )

    enc = pl.pallas_call(
        make_attn_kernel(n),
        out_shape=out_shape,
        grid_spec=pltpu.PrefetchScalarGridSpec(
            num_scalar_prefetch=0,
            grid=(pl.cdiv(B, b_blk),),
            in_specs=in_specs,
            out_specs=out_specs,
        ),
        compiler_params=pltpu.CompilerParams(
            dimension_semantics=("parallel",),
            vmem_limit_bytes=vmem_limit,
        ),
        cost_estimate=cost,
    )(*layer_outs, lens3, *w_segs, attn_b)
    return enc if isinstance(enc, (tuple, list)) else (enc,)


# --------------------------------------------------------------------------
# Parameter padding / fusing for the lane-dense kernel layout
# --------------------------------------------------------------------------
def _pad_gate_cols(w, H, Hp):
    """(rows, 3H) -> (rows, 3Hp) with gate g moved to columns [g*Hp, g*Hp+H)."""
    out = jnp.zeros((w.shape[0], 3 * Hp), jnp.float32)
    for g in range(3):
        out = out.at[:, g * Hp:g * Hp + H].set(w[:, g * H:(g + 1) * H])
    return out


def prepare_kernel_params(params, word_emb_dim):
    """Pad H -> Hp (multiple of 128) and fuse fwd/bwd weights along the gate axis.

    Zero-padded gate columns & W_hh rows keep the padded hidden units exactly 0,
    so the padded layout is numerically identical to the original module.
    """
    kl = []
    din_real, din_pad = word_emb_dim, word_emb_dim
    prev_H = prev_Hp = None
    for layer in params['layers']:
        H = layer['fwd'][1].shape[0]
        Hp = _round_up(H, LANE)
        w_ih_l, b_ih_l, w_hh_l, b_hh_l = [], [], [], []
        for dname in ('fwd', 'bwd'):
            w_ih, w_hh, b_ih, b_hh = layer[dname]
            w_ih_c = _pad_gate_cols(w_ih, H, Hp)                  # (din_real, 3Hp)
            w_ih_p = jnp.zeros((din_pad, 3 * Hp), jnp.float32)
            if prev_H is None:                                    # layer 0: dense input
                w_ih_p = w_ih_p.at[0:din_real].set(w_ih_c)
            else:                                                 # padded prev-layer slab
                w_ih_p = w_ih_p.at[0:prev_H].set(w_ih_c[0:prev_H])
                w_ih_p = w_ih_p.at[prev_Hp:prev_Hp + prev_H].set(w_ih_c[prev_H:2 * prev_H])
            w_hh_p = jnp.zeros((Hp, 3 * Hp), jnp.float32).at[0:H].set(_pad_gate_cols(w_hh, H, Hp))
            w_ih_l.append(w_ih_p)
            w_hh_l.append(w_hh_p)
            b_ih_l.append(_pad_gate_cols(b_ih, H, Hp))
            b_hh_l.append(_pad_gate_cols(b_hh, H, Hp))
        kl.append(dict(
            w_ih=jnp.concatenate(w_ih_l, axis=1),                 # (din_pad, 6Hp)
            b_ih=jnp.concatenate(b_ih_l, axis=1),                 # (1, 6Hp)
            w_hh=jnp.concatenate(w_hh_l, axis=1),                 # (Hp, 6Hp)
            b_hh=jnp.concatenate(b_hh_l, axis=1),                 # (1, 6Hp)
            H=H, Hp=Hp,
        ))
        prev_H, prev_Hp = H, Hp
        din_real, din_pad = 2 * H, 2 * Hp

    # attention weight split into per-layer padded segments
    w = params['attn_w']
    w_segs, off = [], 0
    for l in kl:
        H, Hp = l['H'], l['Hp']
        seg = jnp.zeros((1, 1, 2 * Hp), jnp.float32)
        seg = seg.at[0, 0, 0:H].set(w[off:off + H, 0])
        seg = seg.at[0, 0, Hp:Hp + H].set(w[off + H:off + 2 * H, 0])
        w_segs.append(seg)
        off += 2 * H
    return kl, w_segs, params['attn_b']


# --------------------------------------------------------------------------
# Full forward
# --------------------------------------------------------------------------
def gru_encoder2_forward(sent, lengths, params, use_attention=1, time_chunk=None):
    """Forward pass of GRUEncoder2. sent: (T, B, word_emb_dim), lengths: (B,) int32."""
    T, B, E = sent.shape
    lens_col = lengths.astype(jnp.float32).reshape(B, 1)
    kl, w_segs, attn_b = prepare_kernel_params(params, E)

    x = sent
    layer_outs, hTs = [], []
    for lp in kl:
        out, hT = bigru_layer(x, lens_col, lp, time_chunk=time_chunk)
        layer_outs.append(out)      # (T, B, 2Hp) padded slab (fwd || bwd)
        hTs.append(hT)              # (2, B, Hp)
        x = out                     # inter-layer dropout: identity

    if not use_attention:
        parts = []
        for hT, lp in zip(hTs, kl):
            parts.append(hT[0, :, :lp['H']])
            parts.append(hT[1, :, :lp['H']])
        return jnp.concatenate(parts, axis=1)

    enc_segs = attention_pool(layer_outs, lens_col, w_segs, attn_b)
    parts = []
    for seg, lp in zip(enc_segs, kl):           # strip lane padding (tiny gather)
        parts.append(seg[:, 0:lp['H']])
        parts.append(seg[:, lp['Hp']:lp['Hp'] + lp['H']])
    return jnp.concatenate(parts, axis=1)


# --------------------------------------------------------------------------
# Pure-JAX reference (sanity check for the Pallas kernels)
# --------------------------------------------------------------------------
def _ref_gru_direction(x, lengths, w_ih, w_hh, b_ih, b_hh, reverse):
    T, B, _ = x.shape
    H = w_hh.shape[0]
    mask = (jnp.arange(T)[:, None] < lengths[None, :]).astype(jnp.float32)[:, :, None]
    xs, ms = (jnp.flip(x, 0), jnp.flip(mask, 0)) if reverse else (x, mask)

    def step(h, xm):
        xt, mt = xm
        gi = xt @ w_ih + b_ih
        gh = h @ w_hh + b_hh
        r = jax.nn.sigmoid(gi[:, :H] + gh[:, :H])
        z = jax.nn.sigmoid(gi[:, H:2 * H] + gh[:, H:2 * H])
        n = jnp.tanh(gi[:, 2 * H:] + r * gh[:, 2 * H:])
        hn = (1.0 - z) * n + z * h
        hc = mt * hn + (1.0 - mt) * h
        return hc, mt * hc

    hT, outs = jax.lax.scan(step, jnp.zeros((B, H), jnp.float32), (xs, ms))
    if reverse:
        outs = jnp.flip(outs, 0)
    return outs, hT


def _ref_forward(sent, lengths, params):
    x = sent
    layer_outputs = []
    for layer in params['layers']:
        of, _ = _ref_gru_direction(x, lengths, *layer['fwd'], reverse=False)
        ob, _ = _ref_gru_direction(x, lengths, *layer['bwd'], reverse=True)
        out = jnp.concatenate([of, ob], axis=-1)
        layer_outputs.append(out)
        x = out
    padded_bf = jnp.transpose(jnp.concatenate(layer_outputs, axis=-1), (1, 0, 2))
    T = padded_bf.shape[1]
    s = jnp.tanh(padded_bf @ params['attn_w'] + params['attn_b'])[..., 0]   # (B, T)
    p = jax.nn.softmax(s, axis=1)
    m = (jnp.arange(T)[None, :] < lengths[:, None]).astype(jnp.float32)
    pm = p * m
    pm = pm / jnp.sum(pm, axis=1, keepdims=True)
    return jnp.einsum('bt,btd->bd', pm, padded_bf)


# --------------------------------------------------------------------------
# Deterministic parameter init (shapes follow GRUEncoder2.__init__)
# --------------------------------------------------------------------------
def init_params(key, config):
    num_layer = config['num_layer']
    input_dim = config['word_emb_dim']
    hidden_dim = config['enc_hidden_dim']
    layers = []
    for _ in range(num_layer):
        layer = {}
        for d in ('fwd', 'bwd'):
            key, k1, k2, k3, k4 = jax.random.split(key, 5)
            bound = 1.0 / math.sqrt(hidden_dim)
            layer[d] = (
                jax.random.uniform(k1, (input_dim, 3 * hidden_dim), jnp.float32, -bound, bound),
                jax.random.uniform(k2, (hidden_dim, 3 * hidden_dim), jnp.float32, -bound, bound),
                jax.random.uniform(k3, (1, 3 * hidden_dim), jnp.float32, -bound, bound),
                jax.random.uniform(k4, (1, 3 * hidden_dim), jnp.float32, -bound, bound),
            )
        layers.append(layer)
        input_dim, hidden_dim = hidden_dim * 2, hidden_dim // 2

    d_total = 2 * int(sum(config['enc_hidden_dim'] / (2 ** i) for i in range(num_layer)))
    key, ka, kb = jax.random.split(key, 3)
    bound = 1.0 / math.sqrt(d_total)
    return {
        'layers': layers,
        'attn_w': jax.random.uniform(ka, (d_total, 1), jnp.float32, -bound, bound),
        'attn_b': jax.random.uniform(kb, (1, 1), jnp.float32, -bound, bound),
        'd_total': d_total,
    }


# --------------------------------------------------------------------------
if __name__ == "__main__":
    config = dict(bsize=4, word_emb_dim=16, enc_hidden_dim=32, num_layer=2,
                  pool_type="max", dpout_model=0.0, use_cuda=False, use_attention=1)
    T, B = 8, config['bsize']

    key = jax.random.PRNGKey(0)
    k_x, k_p = jax.random.split(key)
    sent = jax.random.normal(k_x, (T, B, config['word_emb_dim']), dtype=jnp.float32)
    sent_len = jnp.array([8, 5, 7, 3], dtype=jnp.int32)
    params = init_params(k_p, config)

    ref = jax.block_until_ready(_ref_forward(sent, sent_len, params))

    # time_chunk=4 exercises the streamed multi-chunk recurrence (incl. reversed
    # chunk order + cross-chunk hidden carry); None uses the budget-derived chunk
    # (single chunk at this toy T).
    for tc in (4, None):
        encode = gru_encoder2_forward(sent, sent_len, params,
                                      use_attention=config['use_attention'],
                                      time_chunk=tc)
        encode = jax.block_until_ready(encode)
        assert encode.shape == (B, params['d_total']), encode.shape
        assert bool(jnp.all(jnp.isfinite(encode)))
        max_diff = float(jnp.max(jnp.abs(encode - ref)))
        assert max_diff < 1e-2, f"time_chunk={tc}: mismatch vs reference: {max_diff}"

    print("KERNEL_OK")
</pallas_src>

<mosaic_0001>
module attributes {stable_mosaic.version = 11 : i64} {
  func.func @bigru_layer_kernel(%arg0: i32, %arg1: i32, %arg2: memref<4x4x384xf32, #tpu.memory_space<vmem>>, %arg3: memref<4x1xf32, #tpu.memory_space<vmem>>, %arg4: memref<128x384xf32, #tpu.memory_space<vmem>>, %arg5: memref<1x384xf32, #tpu.memory_space<vmem>>, %arg6: memref<4x4x128xf32, #tpu.memory_space<vmem>>, %arg7: memref<1x4x128xf32, #tpu.memory_space<vmem>>, %arg8: memref<4x128xf32, #tpu.memory_space<vmem>>) attributes {dimension_semantics = [#tpu.dimension_semantics<parallel>, #tpu.dimension_semantics<arbitrary>], iteration_bounds = array<i64: 2, 2>, scalar_prefetch = 0 : i64, scratch_operands = 1 : i64, tpu.core_type = #tpu.core_type<tc>, window_params = [{transform_indices = @transform_0, window_bounds = array<i64: 4, 4, 384>}, {pipeline_mode = #tpu.pipeline_mode<synchronous>, transform_indices = @transform_1, window_bounds = array<i64: 4, 1>}, {transform_indices = @transform_2, window_bounds = array<i64: 128, 384>}, {transform_indices = @transform_3, window_bounds = array<i64: 1, 384>}, {transform_indices = @transform_4, window_bounds = array<i64: 4, 4, 128>}, {transform_indices = @transform_5, window_bounds = array<i64: 1, 4, 128>}]} {
    %c0_i32 = arith.constant 0 : i32
    %0 = arith.cmpi eq, %arg1, %c0_i32 : i32
    %1 = arith.extui %0 : i1 to i32
    %c0_i32_0 = arith.constant 0 : i32
    %2 = arith.cmpi ne, %1, %c0_i32_0 : i32
    scf.if %2 {
      %cst_52 = arith.constant 0.000000e+00 : f32
      %213 = vector.broadcast %cst_52 : f32 to vector<4x128xf32>
      %c0_53 = arith.constant 0 : index
      %c0_54 = arith.constant 0 : index
      %214 = vector.load %arg8[%c0_53, %c0_54] : memref<4x128xf32, #tpu.memory_space<vmem>>, vector<4x128xf32>
      tpu.vector_store %arg8[%c0_53, %c0_54], %213 {strides = array<i32>} : memref<4x128xf32, #tpu.memory_space<vmem>>, vector<4x128xf32>,
    } else {
    }
    %c0 = arith.constant 0 : index
    %c0_1 = arith.constant 0 : index
    %3 = vector.load %arg3[%c0, %c0_1] : memref<4x1xf32, #tpu.memory_space<vmem>>, vector<4x1xf32>
    %c0_2 = arith.constant 0 : index
    %c0_3 = arith.constant 0 : index
    %4 = vector.load %arg5[%c0_2, %c0_3] : memref<1x384xf32, #tpu.memory_space<vmem>>, vector<1x384xf32>
    %c2_i32 = arith.constant 2 : i32
    %5 = arith.muli %c2_i32, %arg0 : i32
    %c1_i32 = arith.constant 1 : i32
    %6 = arith.subi %c1_i32, %5 : i32
    %c3_i32 = arith.constant 3 : i32
    %7 = arith.muli %arg0, %c3_i32 : i32
    %c1_i32_4 = arith.constant 1 : i32
    %8 = arith.muli %arg0, %c1_i32_4 : i32
    %9 = arith.muli %6, %arg1 : i32
    %10 = arith.addi %8, %9 : i32
    %c4_i32 = arith.constant 4 : i32
    %11 = arith.muli %10, %c4_i32 : i32
    %c0_5 = arith.constant 0 : index
    %c0_6 = arith.constant 0 : index
    %12 = vector.load %arg8[%c0_5, %c0_6] : memref<4x128xf32, #tpu.memory_space<vmem>>, vector<4x128xf32>
    %c0_i32_7 = arith.constant 0 : i32
    %13 = arith.muli %6, %c0_i32_7 : i32
    %14 = arith.addi %7, %13 : i32
    %15 = arith.index_cast %14 : i32 to index
    %c0_8 = arith.constant 0 : index
    %c0_9 = arith.constant 0 : index
    %16 = vector.load %arg2[%15, %c0_8, %c0_9] : memref<4x4x384xf32, #tpu.memory_space<vmem>>, vector<1x4x384xf32>
    %17 = vector.shape_cast %16 : vector<1x4x384xf32> to vector<4x384xf32>
    %c0_10 = arith.constant 0 : index
    %c0_11 = arith.constant 0 : index
    %18 = vector.load %arg4[%c0_10, %c0_11] : memref<128x384xf32, #tpu.memory_space<vmem>>, vector<128x384xf32>
    %cst = arith.constant dense<0.000000e+00> : vector<4x384xf32>
    %19 = tpu.matmul %12, %18, %cst {dimension_numbers = #tpu.dot_dimension_numbers<[1], [0], [0], [1], [0, 0, 1, 1], [], []>} : vector<4x128xf32>, vector<128x384xf32>, vector<4x384xf32> -> vector<4x384xf32>
    %20 = vector.broadcast %4 : vector<1x384xf32> to vector<4x384xf32>
    %21 = arith.addf %19, %20 : vector<4x384xf32>
    %22 = vector.extract_strided_slice %17 {offsets = [0, 0], sizes = [4, 128], strides = [1, 1]} : vector<4x384xf32> to vector<4x128xf32>
    %23 = vector.extract_strided_slice %21 {offsets = [0, 0], sizes = [4, 128], strides = [1, 1]} : vector<4x384xf32> to vector<4x128xf32>
    %24 = arith.addf %22, %23 : vector<4x128xf32>
    %25 = arith.negf %24 : vector<4x128xf32>
    %26 = math.exp %25 : vector<4x128xf32>
    %cst_12 = arith.constant 1.000000e+00 : f32
    %27 = vector.broadcast %cst_12 : f32 to vector<4x128xf32>
    %28 = arith.addf %27, %26 : vector<4x128xf32>
    %29 = arith.divf %27, %28 : vector<4x128xf32>
    %30 = vector.extract_strided_slice %17 {offsets = [0, 128], sizes = [4, 128], strides = [1, 1]} : vector<4x384xf32> to vector<4x128xf32>
    %31 = vector.extract_strided_slice %21 {offsets = [0, 128], sizes = [4, 128], strides = [1, 1]} : vector<4x384xf32> to vector<4x128xf32>
    %32 = arith.addf %30, %31 : vector<4x128xf32>
    %33 = arith.negf %32 : vector<4x128xf32>
    %34 = math.exp %33 : vector<4x128xf32>
    %cst_13 = arith.constant 1.000000e+00 : f32
    %35 = vector.broadcast %cst_13 : f32 to vector<4x128xf32>
    %36 = arith.addf %35, %34 : vector<4x128xf32>
    %37 = arith.divf %35, %36 : vector<4x128xf32>
    %38 = vector.extract_strided_slice %17 {offsets = [0, 256], sizes = [4, 128], strides = [1, 1]} : vector<4x384xf32> to vector<4x128xf32>
    %39 = vector.extract_strided_slice %21 {offsets = [0, 256], sizes = [4, 128], strides = [1, 1]} : vector<4x384xf32> to vector<4x128xf32>
    %40 = arith.mulf %29, %39 : vector<4x128xf32>
    %41 = arith.addf %38, %40 : vector<4x128xf32>
    %42 = math.tanh %41 : vector<4x128xf32>
    %43 = arith.subf %12, %42 : vector<4x128xf32>
    %44 = arith.mulf %37, %43 : vector<4x128xf32>
    %45 = arith.addf %42, %44 : vector<4x128xf32>
    %46 = arith.addi %11, %14 : i32
    %47 = arith.sitofp %46 : i32 to f32
    %48 = vector.broadcast %47 : f32 to vector<4x1xf32>
    %49 = arith.cmpf olt, %48, %3 : vector<4x1xf32>
    %50 = arith.extui %49 : vector<4x1xi1> to vector<4x1xi32>
    %51 = arith.sitofp %50 : vector<4x1xi32> to vector<4x1xf32>
    %52 = arith.subf %45, %12 : vector<4x128xf32>
    %53 = vector.broadcast %51 : vector<4x1xf32> to vector<4x128xf32>
    %54 = arith.mulf %53, %52 : vector<4x128xf32>
    %55 = arith.addf %12, %54 : vector<4x128xf32>
    %56 = vector.broadcast %51 : vector<4x1xf32> to vector<4x128xf32>
    %57 = arith.mulf %56, %45 : vector<4x128xf32>
    %58 = arith.index_cast %14 : i32 to index
    %c0_14 = arith.constant 0 : index
    %c0_15 = arith.constant 0 : index
    %59 = vector.load %arg6[%58, %c0_14, %c0_15] : memref<4x4x128xf32, #tpu.memory_space<vmem>>, vector<1x4x128xf32>
    %60 = vector.shape_cast %59 : vector<1x4x128xf32> to vector<4x128xf32>
    %61 = vector.shape_cast %57 : vector<4x128xf32> to vector<1x4x128xf32>
    tpu.vector_store %arg6[%58, %c0_14, %c0_15], %61 {strides = array<i32>} : memref<4x4x128xf32, #tpu.memory_space<vmem>>, vector<1x4x128xf32>,
    %c1_i32_16 = arith.constant 1 : i32
    %62 = arith.muli %6, %c1_i32_16 : i32
    %63 = arith.addi %7, %62 : i32
    %64 = arith.index_cast %63 : i32 to index
    %c0_17 = arith.constant 0 : index
    %c0_18 = arith.constant 0 : index
    %65 = vector.load %arg2[%64, %c0_17, %c0_18] : memref<4x4x384xf32, #tpu.memory_space<vmem>>, vector<1x4x384xf32>
    %66 = vector.shape_cast %65 : vector<1x4x384xf32> to vector<4x384xf32>
    %c0_19 = arith.constant 0 : index
    %c0_20 = arith.constant 0 : index
    %67 = vector.load %arg4[%c0_19, %c0_20] : memref<128x384xf32, #tpu.memory_space<vmem>>, vector<128x384xf32>
    %cst_21 = arith.constant dense<0.000000e+00> : vector<4x384xf32>
    %68 = tpu.matmul %55, %67, %cst_21 {dimension_numbers = #tpu.dot_dimension_numbers<[1], [0], [0], [1], [0, 0, 1, 1], [], []>} : vector<4x128xf32>, vector<128x384xf32>, vector<4x384xf32> -> vector<4x384xf32>
    %69 = vector.broadcast %4 : vector<1x384xf32> to vector<4x384xf32>
    %70 = arith.addf %68, %69 : vector<4x384xf32>
    %71 = vector.extract_strided_slice %66 {offsets = [0, 0], sizes = [4, 128], strides = [1, 1]} : vector<4x384xf32> to vector<4x128xf32>
    %72 = vector.extract_strided_slice %70 {offsets = [0, 0], sizes = [4, 128], strides = [1, 1]} : vector<4x384xf32> to vector<4x128xf32>
    %73 = arith.addf %71, %72 : vector<4x128xf32>
    %74 = arith.negf %73 : vector<4x128xf32>
    %75 = math.exp %74 : vector<4x128xf32>
    %cst_22 = arith.constant 1.000000e+00 : f32
    %76 = vector.broadcast %cst_22 : f32 to vector<4x128xf32>
    %77 = arith.addf %76, %75 : vector<4x128xf32>
    %78 = arith.divf %76, %77 : vector<4x128xf32>
    %79 = vector.extract_strided_slice %66 {offsets = [0, 128], sizes = [4, 128], strides = [1, 1]} : vector<4x384xf32> to vector<4x128xf32>
    %80 = vector.extract_strided_slice %70 {offsets = [0, 128], sizes = [4, 128], strides = [1, 1]} : vector<4x384xf32> to vector<4x128xf32>
    %81 = arith.addf %79, %80 : vector<4x128xf32>
    %82 = arith.negf %81 : vector<4x128xf32>
    %83 = math.exp %82 : vector<4x128xf32>
    %cst_23 = arith.constant 1.000000e+00 : f32
    %84 = vector.broadcast %cst_23 : f32 to vector<4x128xf32>
    %85 = arith.addf %84, %83 : vector<4x128xf32>
    %86 = arith.divf %84, %85 : vector<4x128xf32>
    %87 = vector.extract_strided_slice %66 {offsets = [0, 256], sizes = [4, 128], strides = [1, 1]} : vector<4x384xf32> to vector<4x128xf32>
    %88 = vector.extract_strided_slice %70 {offsets = [0, 256], sizes = [4, 128], strides = [1, 1]} : vector<4x384xf32> to vector<4x128xf32>
    %89 = arith.mulf %78, %88 : vector<4x128xf32>
    %90 = arith.addf %87, %89 : vector<4x128xf32>
    %91 = math.tanh %90 : vector<4x128xf32>
    %92 = arith.subf %55, %91 : vector<4x128xf32>
    %93 = arith.mulf %86, %92 : vector<4x128xf32>
    %94 = arith.addf %91, %93 : vector<4x128xf32>
    %95 = arith.addi %11, %63 : i32
    %96 = arith.sitofp %95 : i32 to f32
    %97 = vector.broadcast %96 : f32 to vector<4x1xf32>
    %98 = arith.cmpf olt, %97, %3 : vector<4x1xf32>
    %99 = arith.extui %98 : vector<4x1xi1> to vector<4x1xi32>
    %100 = arith.sitofp %99 : vector<4x1xi32> to vector<4x1xf32>
    %101 = arith.subf %94, %55 : vector<4x128xf32>
    %102 = vector.broadcast %100 : vector<4x1xf32> to vector<4x128xf32>
    %103 = arith.mulf %102, %101 : vector<4x128xf32>
    %104 = arith.addf %55, %103 : vector<4x128xf32>
    %105 = vector.broadcast %100 : vector<4x1xf32> to vector<4x128xf32>
    %106 = arith.mulf %105, %94 : vector<4x128xf32>
    %107 = arith.index_cast %63 : i32 to index
    %c0_24 = arith.constant 0 : index
    %c0_25 = arith.constant 0 : index
    %108 = vector.load %arg6[%107, %c0_24, %c0_25] : memref<4x4x128xf32, #tpu.memory_space<vmem>>, vector<1x4x128xf32>
    %109 = vector.shape_cast %108 : vector<1x4x128xf32> to vector<4x128xf32>
    %110 = vector.shape_cast %106 : vector<4x128xf32> to vector<1x4x128xf32>
    tpu.vector_store %arg6[%107, %c0_24, %c0_25], %110 {strides = array<i32>} : memref<4x4x128xf32, #tpu.memory_space<vmem>>, vector<1x4x128xf32>,
    %c2_i32_26 = arith.constant 2 : i32
    %111 = arith.muli %6, %c2_i32_26 : i32
    %112 = arith.addi %7, %111 : i32
    %113 = arith.index_cast %112 : i32 to index
    %c0_27 = arith.constant 0 : index
    %c0_28 = arith.constant 0 : index
    %114 = vector.load %arg2[%113, %c0_27, %c0_28] : memref<4x4x384xf32, #tpu.memory_space<vmem>>, vector<1x4x384xf32>
    %115 = vector.shape_cast %114 : vector<1x4x384xf32> to vector<4x384xf32>
    %c0_29 = arith.constant 0 : index
    %c0_30 = arith.constant 0 : index
    %116 = vector.load %arg4[%c0_29, %c0_30] : memref<128x384xf32, #tpu.memory_space<vmem>>, vector<128x384xf32>
    %cst_31 = arith.constant dense<0.000000e+00> : vector<4x384xf32>
    %117 = tpu.matmul %104, %116, %cst_31 {dimension_numbers = #tpu.dot_dimension_numbers<[1], [0], [0], [1], [0, 0, 1, 1], [], []>} : vector<4x128xf32>, vector<128x384xf32>, vector<4x384xf32> -> vector<4x384xf32>
    %118 = vector.broadcast %4 : vector<1x384xf32> to vector<4x384xf32>
    %119 = arith.addf %117, %118 : vector<4x384xf32>
    %120 = vector.extract_strided_slice %115 {offsets = [0, 0], sizes = [4, 128], strides = [1, 1]} : vector<4x384xf32> to vector<4x128xf32>
    %121 = vector.extract_strided_slice %119 {offsets = [0, 0], sizes = [4, 128], strides = [1, 1]} : vector<4x384xf32> to vector<4x128xf32>
    %122 = arith.addf %120, %121 : vector<4x128xf32>
    %123 = arith.negf %122 : vector<4x128xf32>
    %124 = math.exp %123 : vector<4x128xf32>
    %cst_32 = arith.constant 1.000000e+00 : f32
    %125 = vector.broadcast %cst_32 : f32 to vector<4x128xf32>
    %126 = arith.addf %125, %124 : vector<4x128xf32>
    %127 = arith.divf %125, %126 : vector<4x128xf32>
    %128 = vector.extract_strided_slice %115 {offsets = [0, 128], sizes = [4, 128], strides = [1, 1]} : vector<4x384xf32> to vector<4x128xf32>
    %129 = vector.extract_strided_slice %119 {offsets = [0, 128], sizes = [4, 128], strides = [1, 1]} : vector<4x384xf32> to vector<4x128xf32>
    %130 = arith.addf %128, %129 : vector<4x128xf32>
    %131 = arith.negf %130 : vector<4x128xf32>
    %132 = math.exp %131 : vector<4x128xf32>
    %cst_33 = arith.constant 1.000000e+00 : f32
    %133 = vector.broadcast %cst_33 : f32 to vector<4x128xf32>
    %134 = arith.addf %133, %132 : vector<4x128xf32>
    %135 = arith.divf %133, %134 : vector<4x128xf32>
    %136 = vector.extract_strided_slice %115 {offsets = [0, 256], sizes = [4, 128], strides = [1, 1]} : vector<4x384xf32> to vector<4x128xf32>
    %137 = vector.extract_strided_slice %119 {offsets = [0, 256], sizes = [4, 128], strides = [1, 1]} : vector<4x384xf32> to vector<4x128xf32>
    %138 = arith.mulf %127, %137 : vector<4x128xf32>
    %139 = arith.addf %136, %138 : vector<4x128xf32>
    %140 = math.tanh %139 : vector<4x128xf32>
    %141 = arith.subf %104, %140 : vector<4x128xf32>
    %142 = arith.mulf %135, %141 : vector<4x128xf32>
    %143 = arith.addf %140, %142 : vector<4x128xf32>
    %144 = arith.addi %11, %112 : i32
    %145 = arith.sitofp %144 : i32 to f32
    %146 = vector.broadcast %145 : f32 to vector<4x1xf32>
    %147 = arith.cmpf olt, %146, %3 : vector<4x1xf32>
    %148 = arith.extui %147 : vector<4x1xi1> to vector<4x1xi32>
    %149 = arith.sitofp %148 : vector<4x1xi32> to vector<4x1xf32>
    %150 = arith.subf %143, %104 : vector<4x128xf32>
    %151 = vector.broadcast %149 : vector<4x1xf32> to vector<4x128xf32>
    %152 = arith.mulf %151, %150 : vector<4x128xf32>
    %153 = arith.addf %104, %152 : vector<4x128xf32>
    %154 = vector.broadcast %149 : vector<4x1xf32> to vector<4x128xf32>
    %155 = arith.mulf %154, %143 : vector<4x128xf32>
    %156 = arith.index_cast %112 : i32 to index
    %c0_34 = arith.constant 0 : index
    %c0_35 = arith.constant 0 : index
    %157 = vector.load %arg6[%156, %c0_34, %c0_35] : memref<4x4x128xf32, #tpu.memory_space<vmem>>, vector<1x4x128xf32>
    %158 = vector.shape_cast %157 : vector<1x4x128xf32> to vector<4x128xf32>
    %159 = vector.shape_cast %155 : vector<4x128xf32> to vector<1x4x128xf32>
    tpu.vector_store %arg6[%156, %c0_34, %c0_35], %159 {strides = array<i32>} : memref<4x4x128xf32, #tpu.memory_space<vmem>>, vector<1x4x128xf32>,
    %c3_i32_36 = arith.constant 3 : i32
    %160 = arith.muli %6, %c3_i32_36 : i32
    %161 = arith.addi %7, %160 : i32
    %162 = arith.index_cast %161 : i32 to index
    %c0_37 = arith.constant 0 : index
    %c0_38 = arith.constant 0 : index
    %163 = vector.load %arg2[%162, %c0_37, %c0_38] : memref<4x4x384xf32, #tpu.memory_space<vmem>>, vector<1x4x384xf32>
    %164 = vector.shape_cast %163 : vector<1x4x384xf32> to vector<4x384xf32>
    %c0_39 = arith.constant 0 : index
    %c0_40 = arith.constant 0 : index
    %165 = vector.load %arg4[%c0_39, %c0_40] : memref<128x384xf32, #tpu.memory_space<vmem>>, vector<128x384xf32>
    %cst_41 = arith.constant dense<0.000000e+00> : vector<4x384xf32>
    %166 = tpu.matmul %153, %165, %cst_41 {dimension_numbers = #tpu.dot_dimension_numbers<[1], [0], [0], [1], [0, 0, 1, 1], [], []>} : vector<4x128xf32>, vector<128x384xf32>, vector<4x384xf32> -> vector<4x384xf32>
    %167 = vector.broadcast %4 : vector<1x384xf32> to vector<4x384xf32>
    %168 = arith.addf %166, %167 : vector<4x384xf32>
    %169 = vector.extract_strided_slice %164 {offsets = [0, 0], sizes = [4, 128], strides = [1, 1]} : vector<4x384xf32> to vector<4x128xf32>
    %170 = vector.extract_strided_slice %168 {offsets = [0, 0], sizes = [4, 128], strides = [1, 1]} : vector<4x384xf32> to vector<4x128xf32>
    %171 = arith.addf %169, %170 : vector<4x128xf32>
    %172 = arith.negf %171 : vector<4x128xf32>
    %173 = math.exp %172 : vector<4x128xf32>
    %cst_42 = arith.constant 1.000000e+00 : f32
    %174 = vector.broadcast %cst_42 : f32 to vector<4x128xf32>
    %175 = arith.addf %174, %173 : vector<4x128xf32>
    %176 = arith.divf %174, %175 : vector<4x128xf32>
    %177 = vector.extract_strided_slice %164 {offsets = [0, 128], sizes = [4, 128], strides = [1, 1]} : vector<4x384xf32> to vector<4x128xf32>
    %178 = vector.extract_strided_slice %168 {offsets = [0, 128], sizes = [4, 128], strides = [1, 1]} : vector<4x384xf32> to vector<4x128xf32>
    %179 = arith.addf %177, %178 : vector<4x128xf32>
    %180 = arith.negf %179 : vector<4x128xf32>
    %181 = math.exp %180 : vector<4x128xf32>
    %cst_43 = arith.constant 1.000000e+00 : f32
    %182 = vector.broadcast %cst_43 : f32 to vector<4x128xf32>
    %183 = arith.addf %182, %181 : vector<4x128xf32>
    %184 = arith.divf %182, %183 : vector<4x128xf32>
    %185 = vector.extract_strided_slice %164 {offsets = [0, 256], sizes = [4, 128], strides = [1, 1]} : vector<4x384xf32> to vector<4x128xf32>
    %186 = vector.extract_strided_slice %168 {offsets = [0, 256], sizes = [4, 128], strides = [1, 1]} : vector<4x384xf32> to vector<4x128xf32>
    %187 = arith.mulf %176, %186 : vector<4x128xf32>
    %188 = arith.addf %185, %187 : vector<4x128xf32>
    %189 = math.tanh %188 : vector<4x128xf32>
    %190 = arith.subf %153, %189 : vector<4x128xf32>
    %191 = arith.mulf %184, %190 : vector<4x128xf32>
    %192 = arith.addf %189, %191 : vector<4x128xf32>
    %193 = arith.addi %11, %161 : i32
    %194 = arith.sitofp %193 : i32 to f32
    %195 = vector.broadcast %194 : f32 to vector<4x1xf32>
    %196 = arith.cmpf olt, %195, %3 : vector<4x1xf32>
    %197 = arith.extui %196 : vector<4x1xi1> to vector<4x1xi32>
    %198 = arith.sitofp %197 : vector<4x1xi32> to vector<4x1xf32>
    %199 = arith.subf %192, %153 : vector<4x128xf32>
    %200 = vector.broadcast %198 : vector<4x1xf32> to vector<4x128xf32>
    %201 = arith.mulf %200, %199 : vector<4x128xf32>
    %202 = arith.addf %153, %201 : vector<4x128xf32>
    %203 = vector.broadcast %198 : vector<4x1xf32> to vector<4x128xf32>
    %204 = arith.mulf %203, %192 : vector<4x128xf32>
    %205 = arith.index_cast %161 : i32 to index
    %c0_44 = arith.constant 0 : index
    %c0_45 = arith.constant 0 : index
    %206 = vector.load %arg6[%205, %c0_44, %c0_45] : memref<4x4x128xf32, #tpu.memory_space<vmem>>, vector<1x4x128xf32>
    %207 = vector.shape_cast %206 : vector<1x4x128xf32> to vector<4x128xf32>
    %208 = vector.shape_cast %204 : vector<4x128xf32> to vector<1x4x128xf32>
    tpu.vector_store %arg6[%205, %c0_44, %c0_45], %208 {strides = array<i32>} : memref<4x4x128xf32, #tpu.memory_space<vmem>>, vector<1x4x128xf32>,
    %c4_i32_46 = arith.constant 4 : i32
    %c0_47 = arith.constant 0 : index
    %c0_48 = arith.constant 0 : index
    %209 = vector.load %arg8[%c0_47, %c0_48] : memref<4x128xf32, #tpu.memory_space<vmem>>, vector<4x128xf32>
    tpu.vector_store %arg8[%c0_47, %c0_48], %202 {strides = array<i32>} : memref<4x128xf32, #tpu.memory_space<vmem>>, vector<4x128xf32>,
    %c0_49 = arith.constant 0 : index
    %c0_50 = arith.constant 0 : index
    %c0_51 = arith.constant 0 : index
    %210 = vector.load %arg7[%c0_49, %c0_50, %c0_51] : memref<1x4x128xf32, #tpu.memory_space<vmem>>, vector<1x4x128xf32>
    %211 = vector.shape_cast %210 : vector<1x4x128xf32> to vector<4x128xf32>
    %212 = vector.shape_cast %202 : vector<4x128xf32> to vector<1x4x128xf32>
    tpu.vector_store %arg7[%c0_49, %c0_50, %c0_51], %212 {strides = array<i32>} : memref<1x4x128xf32, #tpu.memory_space<vmem>>, vector<1x4x128xf32>,
    return
  }
  func.func @transform_0(%arg0: i32, %arg1: i32) -> (i32, i32, i32) {
    %c1_i32 = arith.constant 1 : i32
    %0 = arith.muli %arg0, %c1_i32 : i32
    %c2_i32 = arith.constant 2 : i32
    %1 = arith.muli %c2_i32, %arg0 : i32
    %c1_i32_0 = arith.constant 1 : i32
    %2 = arith.subi %c1_i32_0, %1 : i32
    %3 = arith.muli %2, %arg1 : i32
    %4 = arith.addi %0, %3 : i32
    %c0_i32 = arith.constant 0 : i32
    %c0_i32_1 = arith.constant 0 : i32
    return %4, %c0_i32, %arg0 : i32, i32, i32
  }
  func.func @transform_1(%arg0: i32, %arg1: i32) -> (i32, i32) {
    %c0_i32 = arith.constant 0 : i32
    %c0_i32_0 = arith.constant 0 : i32
    %c0_i32_1 = arith.constant 0 : i32
    return %c0_i32, %c0_i32_0 : i32, i32
  }
  func.func @transform_2(%arg0: i32, %arg1: i32) -> (i32, i32) {
    %c0_i32 = arith.constant 0 : i32
    %c0_i32_0 = arith.constant 0 : i32
    return %c0_i32, %arg0 : i32, i32
  }
  func.func @transform_3(%arg0: i32, %arg1: i32) -> (i32, i32) {
    %c0_i32 = arith.constant 0 : i32
    %c0_i32_0 = arith.constant 0 : i32
    return %c0_i32, %arg0 : i32, i32
  }
  func.func @transform_4(%arg0: i32, %arg1: i32) -> (i32, i32, i32) {
    %c1_i32 = arith.constant 1 : i32
    %0 = arith.muli %arg0, %c1_i32 : i32
    %c2_i32 = arith.constant 2 : i32
    %1 = arith.muli %c2_i32, %arg0 : i32
    %c1_i32_0 = arith.constant 1 : i32
    %2 = arith.subi %c1_i32_0, %1 : i32
    %3 = arith.muli %2, %arg1 : i32
    %4 = arith.addi %0, %3 : i32
    %c0_i32 = arith.constant 0 : i32
    %c0_i32_1 = arith.constant 0 : i32
    return %4, %c0_i32, %arg0 : i32, i32, i32
  }
  func.func @transform_5(%arg0: i32, %arg1: i32) -> (i32, i32, i32) {
    %c0_i32 = arith.constant 0 : i32
    %c0_i32_0 = arith.constant 0 : i32
    %c0_i32_1 = arith.constant 0 : i32
    return %arg0, %c0_i32, %c0_i32_0 : i32, i32, i32
  }
}

</mosaic_0001>

<llo_original>
// kernel: tpu_custom_call.1
$region0: #{tpu_custom_call.1}
  #allocation0 [shape = 'u32[]', space=smem, size = 0x4, offset = 0x4, fixed_abs, tag = 'smem constant byte address 0x4 - core index']
  #allocation1 [shape = 'u32[144,128]{1,0:T(1,128)}', space=vmem, size = 0x12000, scoped, tag = 'internal scratch']
  #allocation2 [shape = 'f32[4,128]{1,0:T(4,128)}', space=vmem, size = 0x800, scoped, tag = 'scratch operand']
  %s0 = inlined_call_operand.hbm [shape: f32[8,4,768], index: 0, kind: input, shape index: {}]
  %s1 = inlined_call_operand.vmem [shape: f32[4,1], index: 1, kind: input, shape index: {}]
  %s2 = inlined_call_operand.hbm [shape: f32[128,768], index: 2, kind: input, shape index: {}]
  %s3 = inlined_call_operand.vmem [shape: f32[1,768], index: 3, kind: input, shape index: {}]
  %s4 = inlined_call_operand.hbm [shape: f32[8,4,256], index: 4, kind: output, shape index: {0}]
  %s5 = inlined_call_operand.hbm [shape: f32[2,4,128], index: 5, kind: output, shape index: {1}]
  %6 = xla_tuple %s4, %s5
  %s7 = sld [smem:[#allocation0]]
  $region69: #{tpu_custom_call.1} parent=0
    _
  %s9 = ssub.s32 1, %s7
  %s10 = scalar_select 0, %s9, %s7
  $region1: #{tpu_custom_call.1} parent=0
    #allocation3 [shape = 'u8[49152]{0}', space=vmem, size = 0xc000, scoped, tag = 'input window, operand 0']
    #allocation4 [shape = 's32[2]{0}', space=sflag, size = 0x8, scoped, tag = 'scoped memory for tpu_custom_call.1']
    #allocation5 [shape = 's32[2]{0}', space=sflag, size = 0x8, scoped, tag = 'scoped memory for tpu_custom_call.1']
    #allocation6 [shape = 'u8[393216]{0}', space=vmem, size = 0x60000, scoped, tag = 'input window, operand 2']
    #allocation7 [shape = 's32[2]{0}', space=sflag, size = 0x8, scoped, tag = 'scoped memory for tpu_custom_call.1']
    #allocation8 [shape = 'u8[16384]{0}', space=vmem, size = 0x4000, scoped, tag = 'output window, operand 0']
    #allocation9 [shape = 'u8[4096]{0}', space=vmem, size = 0x1000, scoped, tag = 'output window, operand 1']
    #allocation10 [shape = 's32[2]{0}', space=sflag, size = 0x8, scoped, tag = 'scoped memory for tpu_custom_call.1']
    %11 = vsyncpa [#allocation4], 0
    %s12 = scalar_lea.sflag [#allocation4], 1
    %13 = vsyncpa %s12, 0
    %14 = vsyncpa [#allocation7], 0
    %s15 = scalar_lea.sflag [#allocation7], 1
    %16 = vsyncpa %s15, 0
    %17 = vsyncpa [#allocation5], 0
    %s18 = scalar_lea.sflag [#allocation5], 1
    %19 = vsyncpa %s18, 0
    %20 = vsyncpa [#allocation10], 0
    %s21 = scalar_lea.sflag [#allocation10], 1
    %22 = vsyncpa %s21, 0
    loop: start=0, step=1, limit=6
    $region2: #{tpu_custom_call.1} parent=1 // loop_pre_header
      _
    $region3: #{tpu_custom_call.1} parent=1 // loop_header
      %s24 = sphi 0, %s28
      %p25 = scmp.ge.s32.totalorder %s24, 6
      %s31 = sphi 0, %s43
      %s32 = sphi 0, %s39
      %s33 = sphi 0, %s31
      %s34 = sphi 0, %s32
      %s35 = sphi 0, %s33
      %s36 = sphi 0, %s34
      %s56 = sphi 0, %s58
      %s59 = sphi 0, %s56
      %s60 = sphi 0, %s59
      %s76 = sphi 0, %s60
      %s80 = sphi 0, %s80
      %s82 = sphi 0, %s80
      %s83 = sphi 0, %s82
      %s97 = sphi 0, %s83
      %s103 = sphi 0, %s105
      %s106 = sphi 0, %s103
      %s107 = sphi 0, %s106
      %s123 = sphi 0, %s107
      %s129 = sphi 0, %s131
      %s132 = sphi 0, %s129
      %s133 = sphi 0, %s132
      %s149 = sphi 0, %s133
      %s165 = sphi 0, %s167
      %s168 = sphi 0, %s165
      %s169 = sphi 0, %s168
      %s185 = sphi 0, %s169
      %s191 = sphi 0, %s193
      %s194 = sphi 0, %s191
      %s195 = sphi 0, %s194
      %s211 = sphi 0, %s195
    $region4: #{tpu_custom_call.1} parent=1 // loop_header_branch
      %27 = sbr.rel (%p25) target = $region8
    $region5: #{tpu_custom_call.1} parent=1 // loop_body
      %s29 = ssub.s32 %s24, 1
      %s30 = ssub.s32 %s24, 2
      %s37 = sadd.s32 1, %s32
      %p38 = scmp.ge.s32.totalorder %s37, 2
      %s39 = scalar_select %p38, 0, %s37
      %s40 = sadd.s32 1, %s31
      %s41 = scalar_select %p38, %s40, %s31
      %p42 = scmp.ge.s32.totalorder %s41, 2
      %s43 = scalar_select %p42, 0, %s41
      %s44 = smul.u32 %s31, 2
      %s45 = ssub.s32 1, %s44
      %s46 = smul.u32 %s45, %s32
      %s47 = sadd.s32 %s31, %s46
      %s48 = smul.u32 %s43, 2
      %s49 = ssub.s32 1, %s48
      %s50 = smul.u32 %s49, %s39
      %s51 = sadd.s32 %s43, %s50
      %s52 = ssub.s32 %s47, %s51
      %s53 = ssub.s32 %s31, %s43
      %s54 = sor.u32 %s52, %s53
      %p55 = scmp.eq.s32.totalorder %s54, 0
      %s57 = sadd.s32 %s56, 1
      %s58 = scalar_select %p55, %s56, %s57
      %p61 = pneg %p55
      %p62 = scmp.eq.s32.totalorder %s24, 3
      %p63 = por %p61, %p62
      %p64 = scmp.ne.s32.totalorder %s56, %s59
      %p65 = scmp.eq.s32.totalorder %s24, 0
      %p66 = por %p64, %p65
      %p67 = scmp.ne.s32.totalorder %s56, %s59
      %p68 = scmp.eq.s32.totalorder %s29, 3
      %p69 = por %p67, %p68
      %p70 = scmp.ne.s32.totalorder %s59, %s60
      %p71 = scmp.eq.s32.totalorder %s29, 0
      %p72 = por %p70, %p71
      %p73 = scmp.ne.s32.totalorder %s59, %s60
      %p74 = scmp.eq.s32.totalorder %s30, 3
      %p75 = por %p73, %p74
      %p77 = scmp.ne.s32.totalorder %s60, %s76
      %p78 = scmp.eq.s32.totalorder %s30, 0
      %p79 = por %p77, %p78
      %s81 = sadd.s32 %s80, 1
      %p84 = scmp.eq.s32.totalorder %s24, 3
      %p85 = scmp.ne.s32.totalorder %s80, %s82
      %p86 = scmp.eq.s32.totalorder %s24, 0
      %p87 = por %p85, %p86
      %p88 = scmp.ne.s32.totalorder %s80, %s82
      %p89 = scmp.eq.s32.totalorder %s29, 3
      %p90 = por %p88, %p89
      %p91 = scmp.ne.s32.totalorder %s82, %s83
      %p92 = scmp.eq.s32.totalorder %s29, 0
      %p93 = por %p91, %p92
      %p94 = scmp.ne.s32.totalorder %s82, %s83
      %p95 = scmp.eq.s32.totalorder %s30, 3
      %p96 = por %p94, %p95
      %p98 = scmp.ne.s32.totalorder %s83, %s97
      %p99 = scmp.eq.s32.totalorder %s30, 0
      %p100 = por %p98, %p99
      %s101 = ssub.s32 %s31, %s43
      %p102 = scmp.eq.s32.totalorder %s101, 0
      %s104 = sadd.s32 %s103, 1
      %s105 = scalar_select %p102, %s103, %s104
      %p108 = pneg %p102
      %p109 = scmp.eq.s32.totalorder %s24, 3
      %p110 = por %p108, %p109
      %p111 = scmp.ne.s32.totalorder %s103, %s106
      %p112 = scmp.eq.s32.totalorder %s24, 0
      %p113 = por %p111, %p112
      %p114 = scmp.ne.s32.totalorder %s103, %s106
      %p115 = scmp.eq.s32.totalorder %s29, 3
      %p116 = por %p114, %p115
      %p117 = scmp.ne.s32.totalorder %s106, %s107
      %p118 = scmp.eq.s32.totalorder %s29, 0
      %p119 = por %p117, %p118
      %p120 = scmp.ne.s32.totalorder %s106, %s107
      %p121 = scmp.eq.s32.totalorder %s30, 3
      %p122 = por %p120, %p121
      %p124 = scmp.ne.s32.totalorder %s107, %s123
      %p125 = scmp.eq.s32.totalorder %s30, 0
      %p126 = por %p124, %p125
      %s127 = ssub.s32 %s31, %s43
      %p128 = scmp.eq.s32.totalorder %s127, 0
      %s130 = sadd.s32 %s129, 1
      %s131 = scalar_select %p128, %s129, %s130
      %p134 = pneg %p128
      %p135 = scmp.eq.s32.totalorder %s24, 3
      %p136 = por %p134, %p135
      %p137 = scmp.ne.s32.totalorder %s129, %s132
      %p138 = scmp.eq.s32.totalorder %s24, 0
      %p139 = por %p137, %p138
      %p140 = scmp.ne.s32.totalorder %s129, %s132
      %p141 = scmp.eq.s32.totalorder %s29, 3
      %p142 = por %p140, %p141
      %p143 = scmp.ne.s32.totalorder %s132, %s133
      %p144 = scmp.eq.s32.totalorder %s29, 0
      %p145 = por %p143, %p144
      %p146 = scmp.ne.s32.totalorder %s132, %s133
      %p147 = scmp.eq.s32.totalorder %s30, 3
      %p148 = por %p146, %p147
      %p150 = scmp.ne.s32.totalorder %s133, %s149
      %p151 = scmp.eq.s32.totalorder %s30, 0
      %p152 = por %p150, %p151
      %s153 = smul.u32 %s31, 2
      %s154 = ssub.s32 1, %s153
      %s155 = smul.u32 %s154, %s32
      %s156 = sadd.s32 %s31, %s155
      %s157 = smul.u32 %s43, 2
      %s158 = ssub.s32 1, %s157
      %s159 = smul.u32 %s158, %s39
      %s160 = sadd.s32 %s43, %s159
      %s161 = ssub.s32 %s156, %s160
      %s162 = ssub.s32 %s31, %s43
      %s163 = sor.u32 %s161, %s162
      %p164 = scmp.eq.s32.totalorder %s163, 0
      %s166 = sadd.s32 %s165, 1
      %s167 = scalar_select %p164, %s165, %s166
      %p170 = pneg %p164
      %p171 = scmp.eq.s32.totalorder %s24, 3
      %p172 = por %p170, %p171
      %p173 = scmp.ne.s32.totalorder %s165, %s168
      %p174 = scmp.eq.s32.totalorder %s24, 0
      %p175 = por %p173, %p174
      %p176 = scmp.ne.s32.totalorder %s165, %s168
      %p177 = scmp.eq.s32.totalorder %s29, 3
      %p178 = por %p176, %p177
      %p179 = scmp.ne.s32.totalorder %s168, %s169
      %p180 = scmp.eq.s32.totalorder %s29, 0
      %p181 = por %p179, %p180
      %p182 = scmp.ne.s32.totalorder %s168, %s169
      %p183 = scmp.eq.s32.totalorder %s30, 3
      %p184 = por %p182, %p183
      %p186 = scmp.ne.s32.totalorder %s169, %s185
      %p187 = scmp.eq.s32.totalorder %s30, 0
      %p188 = por %p186, %p187
      %s189 = ssub.s32 %s31, %s43
      %p190 = scmp.eq.s32.totalorder %s189, 0
      %s192 = sadd.s32 %s191, 1
      %s193 = scalar_select %p190, %s191, %s192
      %p196 = pneg %p190
      %p197 = scmp.eq.s32.totalorder %s24, 3
      %p198 = por %p196, %p197
      %p199 = scmp.ne.s32.totalorder %s191, %s194
      %p200 = scmp.eq.s32.totalorder %s24, 0
      %p201 = por %p199, %p200
      %p202 = scmp.ne.s32.totalorder %s191, %s194
      %p203 = scmp.eq.s32.totalorder %s29, 3
      %p204 = por %p202, %p203
      %p205 = scmp.ne.s32.totalorder %s194, %s195
      %p206 = scmp.eq.s32.totalorder %s29, 0
      %p207 = por %p205, %p206
      %p208 = scmp.ne.s32.totalorder %s194, %s195
      %p209 = scmp.eq.s32.totalorder %s30, 3
      %p210 = por %p208, %p209
      %p212 = scmp.ne.s32.totalorder %s195, %s211
      %p213 = scmp.eq.s32.totalorder %s30, 0
      %p214 = por %p212, %p213
      %p215 = scmp.le.s32.totalorder 1, %s24
      %p216 = scmp.lt.s32.totalorder %s24, 5
      %p217 = pnand %p215, %p216
      %p218 = pneg %p217
      // Predicated region
      $region9: #{tpu_custom_call.1} parent=5 // pred_check
        _
      $region10: #{tpu_custom_call.1} parent=5 // pred_check_branch
        %220 = sbr.rel (%p217) target = $region12
      $region11: #{tpu_custom_call.1} parent=5 // pred_region
        %s221 = ssub.s32 %s24, 1
        // Predicated region
        $region13: #{tpu_custom_call.1} parent=11 // pred_check
          %p222 = pneg %p93
        $region14: #{tpu_custom_call.1} parent=11 // pred_check_branch
          %224 = sbr.rel (%p222) target = $region16
        $region15: #{tpu_custom_call.1} parent=11 // pred_region
          _
        $region16: #{tpu_custom_call.1} parent=11 // pred_fallthru
          _
      $region12: #{tpu_custom_call.1} parent=5 // pred_fallthru
        _
      %p225 = scmp.lt.s32.totalorder %s24, 4
      // Predicated region
      $region17: #{tpu_custom_call.1} parent=5 // pred_check
        %p226 = pneg %p225
      $region18: #{tpu_custom_call.1} parent=5 // pred_check_branch
        %228 = sbr.rel (%p226) target = $region20
      $region19: #{tpu_custom_call.1} parent=5 // pred_region
        // Predicated region
        $region21: #{tpu_custom_call.1} parent=19 // pred_check
          %p229 = pneg %p66
        $region22: #{tpu_custom_call.1} parent=19 // pred_check_branch
          %231 = sbr.rel (%p229) target = $region24
        $region23: #{tpu_custom_call.1} parent=19 // pred_region
          %s232 = sand.u32 %s56, 1
          %s233 = scalar_lea.sflag [#allocation4], %s232
          %s234 = sand.u32 %s56, 1
          %s235 = smul.addr %s234, 48
          %s236 = scalar_lea.vmem [#allocation3], %s235
          %s237 = smul.u32 %s31, 2
          %s238 = ssub.s32 1, %s237
          %s239 = smul.u32 %s238, %s32
          %s240 = sadd.s32 %s31, %s239
          %s241 = smul.u32 4, %s240
          %s242 = smul.u32 3, %s31
          %s244 = ssub.s32 768, 768
          %245 = vsyncadd %s233, %s244
          %s246 = smul.addr %s241, 6
          %s247 = sadd.s32 %s242, %s246
          %s248 = smul.addr %s247, 64
          %s249 = scalar_lea.hbm %s0, %s248
          %s250 = sshll.u32 %s236, 4
          %s251 = int_to_ptr.vmem [resolvable:$true] %s250
          %256 = dma.hbm_to_vmem [thread:$0]  %s249, 768, %s251, %s233, 384, 192, 12
        $region24: #{tpu_custom_call.1} parent=19 // pred_fallthru
          _
        // Predicated region
        $region25: #{tpu_custom_call.1} parent=19 // pred_check
          %p257 = pneg %p113
        $region26: #{tpu_custom_call.1} parent=19 // pred_check_branch
          %259 = sbr.rel (%p257) target = $region28
        $region27: #{tpu_custom_call.1} parent=19 // pred_region
          %s260 = sand.u32 %s103, 1
          %s261 = scalar_lea.sflag [#allocation7], %s260
          %s262 = sand.u32 %s103, 1
          %s263 = smul.addr %s262, 384
          %s264 = scalar_lea.vmem [#allocation6], %s263
          %s265 = smul.u32 3, %s31
          %s267 = ssub.s32 6144, 6144
          %268 = vsyncadd %s261, %s267
          %s269 = smul.addr %s265, 128
          %s270 = scalar_lea.hbm %s2, %s269
          %s271 = sshll.u32 %s264, 4
          %s272 = int_to_ptr.vmem [resolvable:$true] %s271
          %277 = dma.hbm_to_vmem [thread:$0]  %s270, 6144, %s272, %s261, 768, 384, 24
        $region28: #{tpu_custom_call.1} parent=19 // pred_fallthru
          _
        // Predicated region
        $region29: #{tpu_custom_call.1} parent=19 // pred_check
          %p278 = pneg %p139
        $region30: #{tpu_custom_call.1} parent=19 // pred_check_branch
          %280 = sbr.rel (%p278) target = $region32
        $region31: #{tpu_custom_call.1} parent=19 // pred_region
          %s281 = smul.u32 3, %s31
          %p282 = scmp.lt.s32.totalorder %s281, 5
          %s283 = scalar_select %p282, %s281, 5
          %s284 = scalar_lea.vmem %s3, %s283
          %s285 = smul.u32 3, %s31
        $region32: #{tpu_custom_call.1} parent=19 // pred_fallthru
          _
      $region20: #{tpu_custom_call.1} parent=5 // pred_fallthru
        _
      %p286 = scmp.le.s32.totalorder 1, %s24
      %p287 = scmp.lt.s32.totalorder %s24, 5
      %p288 = pnand %p286, %p287
      %p289 = pneg %p288
      // Predicated region
      $region33: #{tpu_custom_call.1} parent=5 // pred_check
        _
      $region34: #{tpu_custom_call.1} parent=5 // pred_check_branch
        %291 = sbr.rel (%p288) target = $region36
      $region35: #{tpu_custom_call.1} parent=5 // pred_region
        %s292 = ssub.s32 %s24, 1
        %s293 = sand.u32 %s59, 1
        %s294 = scalar_lea.sflag [#allocation4], %s293
        %s295 = sand.u32 %s59, 1
        %s296 = smul.addr %s295, 48
        %s297 = scalar_lea.vmem [#allocation3], %s296
        // Predicated region
        $region37: #{tpu_custom_call.1} parent=35 // pred_check
          %p298 = pneg %p72
        $region38: #{tpu_custom_call.1} parent=35 // pred_check_branch
          %300 = sbr.rel (%p298) target = $region40
        $region39: #{tpu_custom_call.1} parent=35 // pred_region
          %301 = dma.done %s294, 768
        $region40: #{tpu_custom_call.1} parent=35 // pred_fallthru
          _
        %s302 = sand.u32 %s106, 1
        %s303 = scalar_lea.sflag [#allocation7], %s302
        %s304 = sand.u32 %s106, 1
        %s305 = smul.addr %s304, 384
        %s306 = scalar_lea.vmem [#allocation6], %s305
        // Predicated region
        $region41: #{tpu_custom_call.1} parent=35 // pred_check
          %p307 = pneg %p119
        $region42: #{tpu_custom_call.1} parent=35 // pred_check_branch
          %309 = sbr.rel (%p307) target = $region44
        $region43: #{tpu_custom_call.1} parent=35 // pred_region
          %310 = dma.done %s303, 6144
        $region44: #{tpu_custom_call.1} parent=35 // pred_fallthru
          _
        %s311 = sand.u32 %s59, 1
        %s312 = scalar_lea.sflag [#allocation4], %s311
        %s313 = sand.u32 %s59, 1
        %s314 = smul.addr %s313, 48
        %s315 = scalar_lea.vmem [#allocation3], %s314
        %p316 = pneg %p72
        %p317 = pneg %p69
        %p318 = pneg %p93
        %p319 = pneg %p90
        %s320 = sand.u32 %s106, 1
        %s321 = scalar_lea.sflag [#allocation7], %s320
        %s322 = sand.u32 %s106, 1
        %s323 = smul.addr %s322, 384
        %s324 = scalar_lea.vmem [#allocation6], %s323
        %p325 = pneg %p119
        %p326 = pneg %p116
        %s327 = smul.u32 3, %s33
        %p328 = scmp.lt.s32.totalorder %s327, 5
        %s329 = scalar_select %p328, %s327, 5
        %s330 = scalar_lea.vmem %s3, %s329
        %p331 = pneg %p145
        %p332 = pneg %p142
        %p333 = pneg %p181
        %p334 = pneg %p178
        %s335 = sand.u32 %s168, 1
        %s336 = scalar_lea.sflag [#allocation5], %s335
        %s337 = sand.u32 %s168, 1
        %s338 = smul.addr %s337, 16
        %s339 = scalar_lea.vmem [#allocation8], %s338
        %p340 = pneg %p207
        %p341 = pneg %p204
        %s342 = sand.u32 %s194, 1
        %s343 = scalar_lea.sflag [#allocation10], %s342
        %s344 = sand.u32 %s194, 1
        %s345 = smul.addr %s344, 4
        %s346 = scalar_lea.vmem [#allocation9], %s345
        %s347 = smul.u32 %s33, 2
        %s348 = ssub.s32 1, %s347
        %s349 = smul.u32 %s348, %s34
        %s350 = sadd.s32 %s33, %s349
        %s351 = smul.u32 4, %s350
        %s352 = smul.u32 3, %s33
        %s353 = smul.u32 3, %s33
        %s354 = smul.u32 3, %s33
        %p355 = scmp.lt.s32.totalorder %s354, 5
        %s356 = scalar_select %p355, %s354, 5
        %s357 = scalar_lea.vmem %s3, %s356
        %s358 = smul.u32 3, %s33
        %s359 = smul.u32 %s33, 2
        %s360 = ssub.s32 1, %s359
        %s361 = smul.u32 %s360, %s34
        %s362 = sadd.s32 %s33, %s361
        %s363 = smul.u32 4, %s362
        %p364 = scmp.eq.s32.totalorder %s34, 0
        // Predicated region
        $region45: #{tpu_custom_call.1} parent=35 // pred_check
          %p365 = pneg %p364
        $region46: #{tpu_custom_call.1} parent=35 // pred_check_branch
          %367 = sbr.rel (%p365) target = $region48
        $region47: #{tpu_custom_call.1} parent=35 // pred_region
          %368 = vst [vmem:[#allocation2] sm:$0xf] 0.0
        $region48: #{tpu_custom_call.1} parent=35 // pred_fallthru
          _
        %v369 = vld [vmem:[%s1] sm:$0xf]
        %v370 = vld [vmem:[%s357] sm:$0x7]
        %s371 = smul.u32 %s33, 2
        %s372 = ssub.s32 1, %s371
        %s373 = smul.u32 %s33, 3
        %s374 = smul.u32 %s372, %s34
        %s375 = sadd.s32 %s33, %s374
        %s376 = smul.u32 %s375, 4
        %v377 = vld [vmem:[#allocation2] sm:$0xf]
        %s378 = smul.u32 %s373, 3
        %s379 = smul.addr %s378, 4
        %s380 = scalar_lea.vmem %s297, %s379 [#allocation3]
        %v381 = vld [vmem:[%s380] sm:$0xff]
        %v382 = vld [vmem:[%s380 + $0x8] sm:$0xf]
        %v383 = vld [vmem:[%s306] sm:$0xff]
        %v384 = vld [vmem:[%s306 + $0x8] sm:$0xff]
        %v385 = vld [vmem:[%s306 + $0x10] sm:$0xff]
        %v386 = vld [vmem:[%s306 + $0x18] sm:$0xff]
        %v387 = vld [vmem:[%s306 + $0x20] sm:$0xff]
        %v388 = vld [vmem:[%s306 + $0x28] sm:$0xff]
        %v389 = vld [vmem:[%s306 + $0x30] sm:$0xff]
        %v390 = vld [vmem:[%s306 + $0x38] sm:$0xff]
        %v391 = vld [vmem:[%s306 + $0x40] sm:$0xff]
        %v392 = vld [vmem:[%s306 + $0x48] sm:$0xff]
        %v393 = vld [vmem:[%s306 + $0x50] sm:$0xff]
        %v394 = vld [vmem:[%s306 + $0x58] sm:$0xff]
        %v395 = vld [vmem:[%s306 + $0x60] sm:$0xff]
        %v396 = vld [vmem:[%s306 + $0x68] sm:$0xff]
        %v397 = vld [vmem:[%s306 + $0x70] sm:$0xff]
        %v398 = vld [vmem:[%s306 + $0x78] sm:$0xff]
        %v399 = vld [vmem:[%s306 + $0x80] sm:$0xff]
        %v400 = vld [vmem:[%s306 + $0x88] sm:$0xff]
        %v401 = vld [vmem:[%s306 + $0x90] sm:$0xff]
        %v402 = vld [vmem:[%s306 + $0x98] sm:$0xff]
        %v403 = vld [vmem:[%s306 + $0xa0] sm:$0xff]
        %v404 = vld [vmem:[%s306 + $0xa8] sm:$0xff]
        %v405 = vld [vmem:[%s306 + $0xb0] sm:$0xff]
        %v406 = vld [vmem:[%s306 + $0xb8] sm:$0xff]
        %v407 = vld [vmem:[%s306 + $0xc0] sm:$0xff]
        %v408 = vld [vmem:[%s306 + $0xc8] sm:$0xff]
        %v409 = vld [vmem:[%s306 + $0xd0] sm:$0xff]
        %v410 = vld [vmem:[%s306 + $0xd8] sm:$0xff]
        %v411 = vld [vmem:[%s306 + $0xe0] sm:$0xff]
        %v412 = vld [vmem:[%s306 + $0xe8] sm:$0xff]
        %v413 = vld [vmem:[%s306 + $0xf0] sm:$0xff]
        %v414 = vld [vmem:[%s306 + $0xf8] sm:$0xff]
        %v415 = vld [vmem:[%s306 + $0x100] sm:$0xff]
        %v416 = vld [vmem:[%s306 + $0x108] sm:$0xff]
        %v417 = vld [vmem:[%s306 + $0x110] sm:$0xff]
        %v418 = vld [vmem:[%s306 + $0x118] sm:$0xff]
        %v419 = vld [vmem:[%s306 + $0x120] sm:$0xff]
        %v420 = vld [vmem:[%s306 + $0x128] sm:$0xff]
        %v421 = vld [vmem:[%s306 + $0x130] sm:$0xff]
        %v422 = vld [vmem:[%s306 + $0x138] sm:$0xff]
        %v423 = vld [vmem:[%s306 + $0x140] sm:$0xff]
        %v424 = vld [vmem:[%s306 + $0x148] sm:$0xff]
        %v425 = vld [vmem:[%s306 + $0x150] sm:$0xff]
        %v426 = vld [vmem:[%s306 + $0x158] sm:$0xff]
        %v427 = vld [vmem:[%s306 + $0x160] sm:$0xff]
        %v428 = vld [vmem:[%s306 + $0x168] sm:$0xff]
        %v429 = vld [vmem:[%s306 + $0x170] sm:$0xff]
        %v430 = vld [vmem:[%s306 + $0x178] sm:$0xff]
        %v432 = vlaneseq
        %v433 = vshrl.u32 %v432, 7
        %v434 = vsub.s32 0, %v433
        %v435 = vrot.slane %v370, %v434
        %v436 = vlaneseq
        %v437 = vshrl.u32 %v436, 7
        %v438 = vsub.s32 1, %v437
        %v439 = vrot.slane %v370, %v438
        %v440 = vlaneseq
        %v441 = vshrl.u32 %v440, 7
        %v442 = vsub.s32 2, %v441
        %v443 = vrot.slane %v370, %v442
        %447 = vmatprep.subr.mxu0 %v384
        %448 = vmatpush1.msra.mxu0 %v383
        %449 = vmatprep.subr.mxu0 %v387
        %450 = vmatpush1.msra.mxu0 %v386
        %451 = vmatprep.subr.mxu0 %v390
        %452 = vmatpush1.msra.mxu0 %v389
        %453 = vmatprep.subr.mxu0 %v393
        %454 = vmatpush1.msra.mxu0 %v392
        %455 = vmatprep.subr.mxu0 %v396
        %456 = vmatpush1.msra.mxu0 %v395
        %457 = vmatprep.subr.mxu0 %v399
        %458 = vmatpush1.msra.mxu0 %v398
        %459 = vmatprep.subr.mxu0 %v402
        %460 = vmatpush1.msra.mxu0 %v401
        %461 = vmatprep.subr.mxu0 %v405
        %462 = vmatpush1.msra.mxu0 %v404
        %463 = vmatprep.subr.mxu0 %v408
        %464 = vmatpush1.msra.mxu0 %v407
        %465 = vmatprep.subr.mxu0 %v411
        %466 = vmatpush1.msra.mxu0 %v410
        %467 = vmatprep.subr.mxu0 %v414
        %468 = vmatpush1.msra.mxu0 %v413
        %469 = vmatprep.subr.mxu0 %v417
        %470 = vmatpush1.msra.mxu0 %v416
        %471 = vmatprep.subr.mxu0 %v420
        %472 = vmatpush1.msra.mxu0 %v419
        %473 = vmatprep.subr.mxu0 %v423
        %474 = vmatpush1.msra.mxu0 %v422
        %475 = vmatprep.subr.mxu0 %v426
        %476 = vmatpush1.msra.mxu0 %v425
        %477 = vmatprep.subr.mxu0 %v429
        %478 = vmatpush1.msra.mxu0 %v428
        %479 = vmatprep.subr.mxu0 0.0
        %480 = vmatpush1.msra.mxu0 0.0
        %481 = vmatprep.subr.mxu0 0.0
        %482 = vmatpush1.msra.mxu0 0.0
        %483 = vmatprep.subr.mxu0 0.0
        %484 = vmatpush1.msra.mxu0 0.0
        %485 = vmatprep.subr.mxu0 0.0
        %486 = vmatpush1.msra.mxu0 0.0
        %487 = vmatprep.subr.mxu0 0.0
        %488 = vmatpush1.msra.mxu0 0.0
        %489 = vmatprep.subr.mxu0 0.0
        %490 = vmatpush1.msra.mxu0 0.0
        %491 = vmatprep.subr.mxu0 0.0
        %492 = vmatpush1.msra.mxu0 0.0
        %493 = vmatprep.subr.mxu0 0.0
        %494 = vmatpush1.msra.mxu0 0.0
        %495 = vmatprep.subr.mxu0 0.0
        %496 = vmatpush1.msra.mxu0 0.0
        %497 = vmatprep.subr.mxu0 0.0
        %498 = vmatpush1.msra.mxu0 0.0
        %499 = vmatprep.subr.mxu0 0.0
        %500 = vmatpush1.msra.mxu0 0.0
        %501 = vmatprep.subr.mxu0 0.0
        %502 = vmatpush1.msra.mxu0 0.0
        %503 = vmatprep.subr.mxu0 0.0
        %504 = vmatpush1.msra.mxu0 0.0
        %505 = vmatprep.subr.mxu0 0.0
        %506 = vmatpush1.msra.mxu0 0.0
        %507 = vmatprep.subr.mxu0 0.0
        %508 = vmatpush1.msra.mxu0 0.0
        %509 = vmatprep.subr.mxu0 0.0
        %510 = vmatpush1.msra.mxu0 0.0
        %511 = vmatprep.mubr.f32.mxu0 0.0
        %512 = vmatmul.mubr.f32.gmra.mrb[0].mxu0 %v377
        %v513 = vpop.f32.mrb[0].mxu0
        %v514 = vadd.f32 %v435, %v513
        %v515 = vpop.f32.mrb[0].mxu0
        %v516 = vadd.f32 %v439, %v515
        %517 = vdwg.mxu0
        %518 = vmatprep.subr.mxu0 0.0
        %519 = vmatpush1.msra.mxu0 %v385
        %520 = vmatprep.subr.mxu0 0.0
        %521 = vmatpush1.msra.mxu0 %v388
        %522 = vmatprep.subr.mxu0 0.0
        %523 = vmatpush1.msra.mxu0 %v391
        %524 = vmatprep.subr.mxu0 0.0
        %525 = vmatpush1.msra.mxu0 %v394
        %526 = vmatprep.subr.mxu0 0.0
        %527 = vmatpush1.msra.mxu0 %v397
        %528 = vmatprep.subr.mxu0 0.0
        %529 = vmatpush1.msra.mxu0 %v400
        %530 = vmatprep.subr.mxu0 0.0
        %531 = vmatpush1.msra.mxu0 %v403
        %532 = vmatprep.subr.mxu0 0.0
        %533 = vmatpush1.msra.mxu0 %v406
        %534 = vmatprep.subr.mxu0 0.0
        %535 = vmatpush1.msra.mxu0 %v409
        %536 = vmatprep.subr.mxu0 0.0
        %537 = vmatpush1.msra.mxu0 %v412
        %538 = vmatprep.subr.mxu0 0.0
        %539 = vmatpush1.msra.mxu0 %v415
        %540 = vmatprep.subr.mxu0 0.0
        %541 = vmatpush1.msra.mxu0 %v418
        %542 = vmatprep.subr.mxu0 0.0
        %543 = vmatpush1.msra.mxu0 %v421
        %544 = vmatprep.subr.mxu0 0.0
        %545 = vmatpush1.msra.mxu0 %v424
        %546 = vmatprep.subr.mxu0 0.0
        %547 = vmatpush1.msra.mxu0 %v427
        %548 = vmatprep.subr.mxu0 0.0
        %549 = vmatpush1.msra.mxu0 %v430
        %550 = vmatprep.subr.mxu0 0.0
        %551 = vmatpush1.msra.mxu0 0.0
        %552 = vmatprep.subr.mxu0 0.0
        %553 = vmatpush1.msra.mxu0 0.0
        %554 = vmatprep.subr.mxu0 0.0
        %555 = vmatpush1.msra.mxu0 0.0
        %556 = vmatprep.subr.mxu0 0.0
        %557 = vmatpush1.msra.mxu0 0.0
        %558 = vmatprep.subr.mxu0 0.0
        %559 = vmatpush1.msra.mxu0 0.0
        %560 = vmatprep.subr.mxu0 0.0
        %561 = vmatpush1.msra.mxu0 0.0
        %562 = vmatprep.subr.mxu0 0.0
        %563 = vmatpush1.msra.mxu0 0.0
        %564 = vmatprep.subr.mxu0 0.0
        %565 = vmatpush1.msra.mxu0 0.0
        %566 = vmatprep.subr.mxu0 0.0
        %567 = vmatpush1.msra.mxu0 0.0
        %568 = vmatprep.subr.mxu0 0.0
        %569 = vmatpush1.msra.mxu0 0.0
        %570 = vmatprep.subr.mxu0 0.0
        %571 = vmatpush1.msra.mxu0 0.0
        %572 = vmatprep.subr.mxu0 0.0
        %573 = vmatpush1.msra.mxu0 0.0
        %574 = vmatprep.subr.mxu0 0.0
        %575 = vmatpush1.msra.mxu0 0.0
        %576 = vmatprep.subr.mxu0 0.0
        %577 = vmatpush1.msra.mxu0 0.0
        %578 = vmatprep.subr.mxu0 0.0
        %579 = vmatpush1.msra.mxu0 0.0
        %580 = vmatprep.subr.mxu0 0.0
        %581 = vmatpush1.msra.mxu0 0.0
        %582 = vmatprep.mubr.f32.mxu0 0.0
        %583 = vmatmul.mubr.f32.gmra.mrb[0].mxu0 %v377
        %v584 = vpop.f32.mrb[0].mxu0
        %v585 = vadd.f32 %v443, %v584
        %v586 = vpop.f32.mrb[0].mxu0
        %587 = vdwg.mxu0
        %v588 = vadd.f32 %v381, %v514
        %v589 = vxor.u32 %v588, 2147483648
        %v590 = vmul.f32 %v589, 1.442695
        %v591 = vpow.pop %v590
        %v592 = vadd.f32 %v591, 1.0
        %v593 = vrcp.pop %v592
        %v594 = vmul.f32 1.0, %v593
        %v596 = vrot.slane %v381, 4
        %v598 = vadd.f32 %v596, %v516
        %v599 = vxor.u32 %v598, 2147483648
        %v600 = vmul.f32 %v599, 1.442695
        %v601 = vpow.pop %v600
        %v602 = vadd.f32 %v601, 1.0
        %v603 = vrcp.pop %v602
        %v604 = vmul.f32 1.0, %v603
        %v605 = vmul.f32 %v594, %v585
        %v606 = vadd.f32 %v382, %v605
        %v607 = vtanh.pop %v606
        %v608 = vsub.f32 %v377, %v607
        %v609 = vmul.f32 %v604, %v608
        %v610 = vadd.f32 %v607, %v609
        %s611 = sadd.s32 %s376, %s373
        %s612 = scvt.s32.f32 %s611
        %v613 = vstv %s612
        %vm614 = vcmp.lt.f32.partialorder %v613, %v369
        %v615 = vsel %vm614, 1, 0
        %v616 = vcvt.s32.f32 %v615
        %v617 = vsub.f32 %v610, %v377
        %619 = vset.pattern.permute.xlu0 0
        %620 = vperm.xlu0 %619, %v616
        %v621 = vpop.permute.xlu0 %620
        %v623 = vmul.f32 %v621, %v617
        %v624 = vadd.f32 %v377, %v623
        %v625 = vmul.f32 %v621, %v610
        %s626 = smul.u32 %s373, 4
        %s627 = scalar_lea.vmem %s339, %s626 [#allocation8]
        %628 = vst [vmem:[%s627] sm:$0xf] %v625
        %s629 = sadd.s32 %s373, %s372
        %s630 = smul.u32 %s629, 3
        %s631 = smul.addr %s630, 4
        %s632 = scalar_lea.vmem %s297, %s631 [#allocation3]
        %v633 = vld [vmem:[%s632] sm:$0xff]
        %v634 = vld [vmem:[%s632 + $0x8] sm:$0xf]
        %v635 = vld [vmem:[%s306] sm:$0xff]
        %v636 = vld [vmem:[%s306 + $0x8] sm:$0xff]
        %v637 = vld [vmem:[%s306 + $0x10] sm:$0xff]
        %v638 = vld [vmem:[%s306 + $0x18] sm:$0xff]
        %v639 = vld [vmem:[%s306 + $0x20] sm:$0xff]
        %v640 = vld [vmem:[%s306 + $0x28] sm:$0xff]
        %v641 = vld [vmem:[%s306 + $0x30] sm:$0xff]
        %v642 = vld [vmem:[%s306 + $0x38] sm:$0xff]
        %v643 = vld [vmem:[%s306 + $0x40] sm:$0xff]
        %v644 = vld [vmem:[%s306 + $0x48] sm:$0xff]
        %v645 = vld [vmem:[%s306 + $0x50] sm:$0xff]
        %v646 = vld [vmem:[%s306 + $0x58] sm:$0xff]
        %v647 = vld [vmem:[%s306 + $0x60] sm:$0xff]
        %v648 = vld [vmem:[%s306 + $0x68] sm:$0xff]
        %v649 = vld [vmem:[%s306 + $0x70] sm:$0xff]
        %v650 = vld [vmem:[%s306 + $0x78] sm:$0xff]
        %v651 = vld [vmem:[%s306 + $0x80] sm:$0xff]
        %v652 = vld [vmem:[%s306 + $0x88] sm:$0xff]
        %v653 = vld [vmem:[%s306 + $0x90] sm:$0xff]
        %v654 = vld [vmem:[%s306 + $0x98] sm:$0xff]
        %v655 = vld [vmem:[%s306 + $0xa0] sm:$0xff]
        %v656 = vld [vmem:[%s306 + $0xa8] sm:$0xff]
        %v657 = vld [vmem:[%s306 + $0xb0] sm:$0xff]
        %v658 = vld [vmem:[%s306 + $0xb8] sm:$0xff]
        %v659 = vld [vmem:[%s306 + $0xc0] sm:$0xff]
        %v660 = vld [vmem:[%s306 + $0xc8] sm:$0xff]
        %v661 = vld [vmem:[%s306 + $0xd0] sm:$0xff]
        %v662 = vld [vmem:[%s306 + $0xd8] sm:$0xff]
        %v663 = vld [vmem:[%s306 + $0xe0] sm:$0xff]
        %v664 = vld [vmem:[%s306 + $0xe8] sm:$0xff]
        %v665 = vld [vmem:[%s306 + $0xf0] sm:$0xff]
        %v666 = vld [vmem:[%s306 + $0xf8] sm:$0xff]
        %v667 = vld [vmem:[%s306 + $0x100] sm:$0xff]
        %v668 = vld [vmem:[%s306 + $0x108] sm:$0xff]
        %v669 = vld [vmem:[%s306 + $0x110] sm:$0xff]
        %v670 = vld [vmem:[%s306 + $0x118] sm:$0xff]
        %v671 = vld [vmem:[%s306 + $0x120] sm:$0xff]
        %v672 = vld [vmem:[%s306 + $0x128] sm:$0xff]
        %v673 = vld [vmem:[%s306 + $0x130] sm:$0xff]
        %v674 = vld [vmem:[%s306 + $0x138] sm:$0xff]
        %v675 = vld [vmem:[%s306 + $0x140] sm:$0xff]
        %v676 = vld [vmem:[%s306 + $0x148] sm:$0xff]
        %v677 = vld [vmem:[%s306 + $0x150] sm:$0xff]
        %v678 = vld [vmem:[%s306 + $0x158] sm:$0xff]
        %v679 = vld [vmem:[%s306 + $0x160] sm:$0xff]
        %v680 = vld [vmem:[%s306 + $0x168] sm:$0xff]
        %v681 = vld [vmem:[%s306 + $0x170] sm:$0xff]
        %v682 = vld [vmem:[%s306 + $0x178] sm:$0xff]
        %683 = vmatprep.subr.mxu0 %v636
        %684 = vmatpush1.msra.mxu0 %v635
        %685 = vmatprep.subr.mxu0 %v639
        %686 = vmatpush1.msra.mxu0 %v638
        %687 = vmatprep.subr.mxu0 %v642
        %688 = vmatpush1.msra.mxu0 %v641
        %689 = vmatprep.subr.mxu0 %v645
        %690 = vmatpush1.msra.mxu0 %v644
        %691 = vmatprep.subr.mxu0 %v648
        %692 = vmatpush1.msra.mxu0 %v647
        %693 = vmatprep.subr.mxu0 %v651
        %694 = vmatpush1.msra.mxu0 %v650
        %695 = vmatprep.subr.mxu0 %v654
        %696 = vmatpush1.msra.mxu0 %v653
        %697 = vmatprep.subr.mxu0 %v657
        %698 = vmatpush1.msra.mxu0 %v656
        %699 = vmatprep.subr.mxu0 %v660
        %700 = vmatpush1.msra.mxu0 %v659
        %701 = vmatprep.subr.mxu0 %v663
        %702 = vmatpush1.msra.mxu0 %v662
        %703 = vmatprep.subr.mxu0 %v666
        %704 = vmatpush1.msra.mxu0 %v665
        %705 = vmatprep.subr.mxu0 %v669
        %706 = vmatpush1.msra.mxu0 %v668
        %707 = vmatprep.subr.mxu0 %v672
        %708 = vmatpush1.msra.mxu0 %v671
        %709 = vmatprep.subr.mxu0 %v675
        %710 = vmatpush1.msra.mxu0 %v674
        %711 = vmatprep.subr.mxu0 %v678
        %712 = vmatpush1.msra.mxu0 %v677
        %713 = vmatprep.subr.mxu0 %v681
        %714 = vmatpush1.msra.mxu0 %v680
        %715 = vmatprep.subr.mxu0 0.0
        %716 = vmatpush1.msra.mxu0 0.0
        %717 = vmatprep.subr.mxu0 0.0
        %718 = vmatpush1.msra.mxu0 0.0
        %719 = vmatprep.subr.mxu0 0.0
        %720 = vmatpush1.msra.mxu0 0.0
        %721 = vmatprep.subr.mxu0 0.0
        %722 = vmatpush1.msra.mxu0 0.0
        %723 = vmatprep.subr.mxu0 0.0
        %724 = vmatpush1.msra.mxu0 0.0
        %725 = vmatprep.subr.mxu0 0.0
        %726 = vmatpush1.msra.mxu0 0.0
        %727 = vmatprep.subr.mxu0 0.0
        %728 = vmatpush1.msra.mxu0 0.0
        %729 = vmatprep.subr.mxu0 0.0
        %730 = vmatpush1.msra.mxu0 0.0
        %731 = vmatprep.subr.mxu0 0.0
        %732 = vmatpush1.msra.mxu0 0.0
        %733 = vmatprep.subr.mxu0 0.0
        %734 = vmatpush1.msra.mxu0 0.0
        %735 = vmatprep.subr.mxu0 0.0
        %736 = vmatpush1.msra.mxu0 0.0
        %737 = vmatprep.subr.mxu0 0.0
        %738 = vmatpush1.msra.mxu0 0.0
        %739 = vmatprep.subr.mxu0 0.0
        %740 = vmatpush1.msra.mxu0 0.0
        %741 = vmatprep.subr.mxu0 0.0
        %742 = vmatpush1.msra.mxu0 0.0
        %743 = vmatprep.subr.mxu0 0.0
        %744 = vmatpush1.msra.mxu0 0.0
        %745 = vmatprep.subr.mxu0 0.0
        %746 = vmatpush1.msra.mxu0 0.0
        %747 = vmatprep.mubr.f32.mxu0 0.0
        %748 = vmatmul.mubr.f32.gmra.mrb[0].mxu0 %v624
        %v749 = vpop.f32.mrb[0].mxu0
        %v750 = vadd.f32 %v435, %v749
        %v751 = vpop.f32.mrb[0].mxu0
        %v752 = vadd.f32 %v439, %v751
        %753 = vdwg.mxu0
        %754 = vmatprep.subr.mxu0 0.0
        %755 = vmatpush1.msra.mxu0 %v637
        %756 = vmatprep.subr.mxu0 0.0
        %757 = vmatpush1.msra.mxu0 %v640
        %758 = vmatprep.subr.mxu0 0.0
        %759 = vmatpush1.msra.mxu0 %v643
        %760 = vmatprep.subr.mxu0 0.0
        %761 = vmatpush1.msra.mxu0 %v646
        %762 = vmatprep.subr.mxu0 0.0
        %763 = vmatpush1.msra.mxu0 %v649
        %764 = vmatprep.subr.mxu0 0.0
        %765 = vmatpush1.msra.mxu0 %v652
        %766 = vmatprep.subr.mxu0 0.0
        %767 = vmatpush1.msra.mxu0 %v655
        %768 = vmatprep.subr.mxu0 0.0
        %769 = vmatpush1.msra.mxu0 %v658
        %770 = vmatprep.subr.mxu0 0.0
        %771 = vmatpush1.msra.mxu0 %v661
        %772 = vmatprep.subr.mxu0 0.0
        %773 = vmatpush1.msra.mxu0 %v664
        %774 = vmatprep.subr.mxu0 0.0
        %775 = vmatpush1.msra.mxu0 %v667
        %776 = vmatprep.subr.mxu0 0.0
        %777 = vmatpush1.msra.mxu0 %v670
        %778 = vmatprep.subr.mxu0 0.0
        %779 = vmatpush1.msra.mxu0 %v673
        %780 = vmatprep.subr.mxu0 0.0
        %781 = vmatpush1.msra.mxu0 %v676
        %782 = vmatprep.subr.mxu0 0.0
        %783 = vmatpush1.msra.mxu0 %v679
        %784 = vmatprep.subr.mxu0 0.0
        %785 = vmatpush1.msra.mxu0 %v682
        %786 = vmatprep.subr.mxu0 0.0
        %787 = vmatpush1.msra.mxu0 0.0
        %788 = vmatprep.subr.mxu0 0.0
        %789 = vmatpush1.msra.mxu0 0.0
        %790 = vmatprep.subr.mxu0 0.0
        %791 = vmatpush1.msra.mxu0 0.0
        %792 = vmatprep.subr.mxu0 0.0
        %793 = vmatpush1.msra.mxu0 0.0
        %794 = vmatprep.subr.mxu0 0.0
        %795 = vmatpush1.msra.mxu0 0.0
        %796 = vmatprep.subr.mxu0 0.0
        %797 = vmatpush1.msra.mxu0 0.0
        %798 = vmatprep.subr.mxu0 0.0
        %799 = vmatpush1.msra.mxu0 0.0
        %800 = vmatprep.subr.mxu0 0.0
        %801 = vmatpush1.msra.mxu0 0.0
        %802 = vmatprep.subr.mxu0 0.0
        %803 = vmatpush1.msra.mxu0 0.0
        %804 = vmatprep.subr.mxu0 0.0
        %805 = vmatpush1.msra.mxu0 0.0
        %806 = vmatprep.subr.mxu0 0.0
        %807 = vmatpush1.msra.mxu0 0.0
        %808 = vmatprep.subr.mxu0 0.0
        %809 = vmatpush1.msra.mxu0 0.0
        %810 = vmatprep.subr.mxu0 0.0
        %811 = vmatpush1.msra.mxu0 0.0
        %812 = vmatprep.subr.mxu0 0.0
        %813 = vmatpush1.msra.mxu0 0.0
        %814 = vmatprep.subr.mxu0 0.0
        %815 = vmatpush1.msra.mxu0 0.0
        %816 = vmatprep.subr.mxu0 0.0
        %817 = vmatpush1.msra.mxu0 0.0
        %818 = vmatprep.mubr.f32.mxu0 0.0
        %819 = vmatmul.mubr.f32.gmra.mrb[0].mxu0 %v624
        %v820 = vpop.f32.mrb[0].mxu0
        %v821 = vadd.f32 %v443, %v820
        %v822 = vpop.f32.mrb[0].mxu0
        %823 = vdwg.mxu0
        %v824 = vadd.f32 %v633, %v750
        %v825 = vxor.u32 %v824, 2147483648
        %v826 = vmul.f32 %v825, 1.442695
        %v827 = vpow.pop %v826
        %v828 = vadd.f32 %v827, 1.0
        %v829 = vrcp.pop %v828
        %v830 = vmul.f32 1.0, %v829
        %v832 = vrot.slane %v633, 4
        %v834 = vadd.f32 %v832, %v752
        %v835 = vxor.u32 %v834, 2147483648
        %v836 = vmul.f32 %v835, 1.442695
        %v837 = vpow.pop %v836
        %v838 = vadd.f32 %v837, 1.0
        %v839 = vrcp.pop %v838
        %v840 = vmul.f32 1.0, %v839
        %v841 = vmul.f32 %v830, %v821
        %v842 = vadd.f32 %v634, %v841
        %v843 = vtanh.pop %v842
        %v844 = vsub.f32 %v624, %v843
        %v845 = vmul.f32 %v840, %v844
        %v846 = vadd.f32 %v843, %v845
        %s847 = sadd.s32 %s376, %s629
        %s848 = scvt.s32.f32 %s847
        %v849 = vstv %s848
        %vm850 = vcmp.lt.f32.partialorder %v849, %v369
        %v851 = vsel %vm850, 1, 0
        %v852 = vcvt.s32.f32 %v851
        %v853 = vsub.f32 %v846, %v624
        %855 = vset.pattern.permute.xlu0 0
        %856 = vperm.xlu0 %855, %v852
        %v857 = vpop.permute.xlu0 %856
        %v859 = vmul.f32 %v857, %v853
        %v860 = vadd.f32 %v624, %v859
        %v861 = vmul.f32 %v857, %v846
        %s862 = smul.u32 %s629, 4
        %s863 = scalar_lea.vmem %s339, %s862 [#allocation8]
        %864 = vst [vmem:[%s863] sm:$0xf] %v861
        %s865 = smul.u32 %s372, 2
        %s866 = sadd.s32 %s373, %s865
        %s867 = smul.u32 %s866, 3
        %s868 = smul.addr %s867, 4
        %s869 = scalar_lea.vmem %s297, %s868 [#allocation3]
        %v870 = vld [vmem:[%s869] sm:$0xff]
        %v871 = vld [vmem:[%s869 + $0x8] sm:$0xf]
        %v872 = vld [vmem:[%s306] sm:$0xff]
        %v873 = vld [vmem:[%s306 + $0x8] sm:$0xff]
        %v874 = vld [vmem:[%s306 + $0x10] sm:$0xff]
        %v875 = vld [vmem:[%s306 + $0x18] sm:$0xff]
        %v876 = vld [vmem:[%s306 + $0x20] sm:$0xff]
        %v877 = vld [vmem:[%s306 + $0x28] sm:$0xff]
        %v878 = vld [vmem:[%s306 + $0x30] sm:$0xff]
        %v879 = vld [vmem:[%s306 + $0x38] sm:$0xff]
        %v880 = vld [vmem:[%s306 + $0x40] sm:$0xff]
        %v881 = vld [vmem:[%s306 + $0x48] sm:$0xff]
        %v882 = vld [vmem:[%s306 + $0x50] sm:$0xff]
        %v883 = vld [vmem:[%s306 + $0x58] sm:$0xff]
        %v884 = vld [vmem:[%s306 + $0x60] sm:$0xff]
        %v885 = vld [vmem:[%s306 + $0x68] sm:$0xff]
        %v886 = vld [vmem:[%s306 + $0x70] sm:$0xff]
        %v887 = vld [vmem:[%s306 + $0x78] sm:$0xff]
        %v888 = vld [vmem:[%s306 + $0x80] sm:$0xff]
        %v889 = vld [vmem:[%s306 + $0x88] sm:$0xff]
        %v890 = vld [vmem:[%s306 + $0x90] sm:$0xff]
        %v891 = vld [vmem:[%s306 + $0x98] sm:$0xff]
        %v892 = vld [vmem:[%s306 + $0xa0] sm:$0xff]
        %v893 = vld [vmem:[%s306 + $0xa8] sm:$0xff]
        %v894 = vld [vmem:[%s306 + $0xb0] sm:$0xff]
        %v895 = vld [vmem:[%s306 + $0xb8] sm:$0xff]
        %v896 = vld [vmem:[%s306 + $0xc0] sm:$0xff]
        %v897 = vld [vmem:[%s306 + $0xc8] sm:$0xff]
        %v898 = vld [vmem:[%s306 + $0xd0] sm:$0xff]
        %v899 = vld [vmem:[%s306 + $0xd8] sm:$0xff]
        %v900 = vld [vmem:[%s306 + $0xe0] sm:$0xff]
        %v901 = vld [vmem:[%s306 + $0xe8] sm:$0xff]
        %v902 = vld [vmem:[%s306 + $0xf0] sm:$0xff]
        %v903 = vld [vmem:[%s306 + $0xf8] sm:$0xff]
        %v904 = vld [vmem:[%s306 + $0x100] sm:$0xff]
        %v905 = vld [vmem:[%s306 + $0x108] sm:$0xff]
        %v906 = vld [vmem:[%s306 + $0x110] sm:$0xff]
        %v907 = vld [vmem:[%s306 + $0x118] sm:$0xff]
        %v908 = vld [vmem:[%s306 + $0x120] sm:$0xff]
        %v909 = vld [vmem:[%s306 + $0x128] sm:$0xff]
        %v910 = vld [vmem:[%s306 + $0x130] sm:$0xff]
        %v911 = vld [vmem:[%s306 + $0x138] sm:$0xff]
        %v912 = vld [vmem:[%s306 + $0x140] sm:$0xff]
        %v913 = vld [vmem:[%s306 + $0x148] sm:$0xff]
        %v914 = vld [vmem:[%s306 + $0x150] sm:$0xff]
        %v915 = vld [vmem:[%s306 + $0x158] sm:$0xff]
        %v916 = vld [vmem:[%s306 + $0x160] sm:$0xff]
        %v917 = vld [vmem:[%s306 + $0x168] sm:$0xff]
        %v918 = vld [vmem:[%s306 + $0x170] sm:$0xff]
        %v919 = vld [vmem:[%s306 + $0x178] sm:$0xff]
        %920 = vmatprep.subr.mxu0 %v873
        %921 = vmatpush1.msra.mxu0 %v872
        %922 = vmatprep.subr.mxu0 %v876
        %923 = vmatpush1.msra.mxu0 %v875
        %924 = vmatprep.subr.mxu0 %v879
        %925 = vmatpush1.msra.mxu0 %v878
        %926 = vmatprep.subr.mxu0 %v882
        %927 = vmatpush1.msra.mxu0 %v881
        %928 = vmatprep.subr.mxu0 %v885
        %929 = vmatpush1.msra.mxu0 %v884
        %930 = vmatprep.subr.mxu0 %v888
        %931 = vmatpush1.msra.mxu0 %v887
        %932 = vmatprep.subr.mxu0 %v891
        %933 = vmatpush1.msra.mxu0 %v890
        %934 = vmatprep.subr.mxu0 %v894
        %935 = vmatpush1.msra.mxu0 %v893
        %936 = vmatprep.subr.mxu0 %v897
        %937 = vmatpush1.msra.mxu0 %v896
        %938 = vmatprep.subr.mxu0 %v900
        %939 = vmatpush1.msra.mxu0 %v899
        %940 = vmatprep.subr.mxu0 %v903
        %941 = vmatpush1.msra.mxu0 %v902
        %942 = vmatprep.subr.mxu0 %v906
        %943 = vmatpush1.msra.mxu0 %v905
        %944 = vmatprep.subr.mxu0 %v909
        %945 = vmatpush1.msra.mxu0 %v908
        %946 = vmatprep.subr.mxu0 %v912
        %947 = vmatpush1.msra.mxu0 %v911
        %948 = vmatprep.subr.mxu0 %v915
        %949 = vmatpush1.msra.mxu0 %v914
        %950 = vmatprep.subr.mxu0 %v918
        %951 = vmatpush1.msra.mxu0 %v917
        %952 = vmatprep.subr.mxu0 0.0
        %953 = vmatpush1.msra.mxu0 0.0
        %954 = vmatprep.subr.mxu0 0.0
        %955 = vmatpush1.msra.mxu0 0.0
        %956 = vmatprep.subr.mxu0 0.0
        %957 = vmatpush1.msra.mxu0 0.0
        %958 = vmatprep.subr.mxu0 0.0
        %959 = vmatpush1.msra.mxu0 0.0
        %960 = vmatprep.subr.mxu0 0.0
        %961 = vmatpush1.msra.mxu0 0.0
        %962 = vmatprep.subr.mxu0 0.0
        %963 = vmatpush1.msra.mxu0 0.0
        %964 = vmatprep.subr.mxu0 0.0
        %965 = vmatpush1.msra.mxu0 0.0
        %966 = vmatprep.subr.mxu0 0.0
        %967 = vmatpush1.msra.mxu0 0.0
        %968 = vmatprep.subr.mxu0 0.0
        %969 = vmatpush1.msra.mxu0 0.0
        %970 = vmatprep.subr.mxu0 0.0
        %971 = vmatpush1.msra.mxu0 0.0
        %972 = vmatprep.subr.mxu0 0.0
        %973 = vmatpush1.msra.mxu0 0.0
        %974 = vmatprep.subr.mxu0 0.0
        %975 = vmatpush1.msra.mxu0 0.0
        %976 = vmatprep.subr.mxu0 0.0
        %977 = vmatpush1.msra.mxu0 0.0
        %978 = vmatprep.subr.mxu0 0.0
        %979 = vmatpush1.msra.mxu0 0.0
        %980 = vmatprep.subr.mxu0 0.0
        %981 = vmatpush1.msra.mxu0 0.0
        %982 = vmatprep.subr.mxu0 0.0
        %983 = vmatpush1.msra.mxu0 0.0
        %984 = vmatprep.mubr.f32.mxu0 0.0
        %985 = vmatmul.mubr.f32.gmra.mrb[0].mxu0 %v860
        %v986 = vpop.f32.mrb[0].mxu0
        %v987 = vadd.f32 %v435, %v986
        %v988 = vpop.f32.mrb[0].mxu0
        %v989 = vadd.f32 %v439, %v988
        %990 = vdwg.mxu0
        %991 = vmatprep.subr.mxu0 0.0
        %992 = vmatpush1.msra.mxu0 %v874
        %993 = vmatprep.subr.mxu0 0.0
        %994 = vmatpush1.msra.mxu0 %v877
        %995 = vmatprep.subr.mxu0 0.0
        %996 = vmatpush1.msra.mxu0 %v880
        %997 = vmatprep.subr.mxu0 0.0
        %998 = vmatpush1.msra.mxu0 %v883
        %999 = vmatprep.subr.mxu0 0.0
        %1000 = vmatpush1.msra.mxu0 %v886
        %1001 = vmatprep.subr.mxu0 0.0
        %1002 = vmatpush1.msra.mxu0 %v889
        %1003 = vmatprep.subr.mxu0 0.0
        %1004 = vmatpush1.msra.mxu0 %v892
        %1005 = vmatprep.subr.mxu0 0.0
        %1006 = vmatpush1.msra.mxu0 %v895
        %1007 = vmatprep.subr.mxu0 0.0
        %1008 = vmatpush1.msra.mxu0 %v898
        %1009 = vmatprep.subr.mxu0 0.0
        %1010 = vmatpush1.msra.mxu0 %v901
        %1011 = vmatprep.subr.mxu0 0.0
        %1012 = vmatpush1.msra.mxu0 %v904
        %1013 = vmatprep.subr.mxu0 0.0
        %1014 = vmatpush1.msra.mxu0 %v907
        %1015 = vmatprep.subr.mxu0 0.0
        %1016 = vmatpush1.msra.mxu0 %v910
        %1017 = vmatprep.subr.mxu0 0.0
        %1018 = vmatpush1.msra.mxu0 %v913
        %1019 = vmatprep.subr.mxu0 0.0
        %1020 = vmatpush1.msra.mxu0 %v916
        %1021 = vmatprep.subr.mxu0 0.0
        %1022 = vmatpush1.msra.mxu0 %v919
        %1023 = vmatprep.subr.mxu0 0.0
        %1024 = vmatpush1.msra.mxu0 0.0
        %1025 = vmatprep.subr.mxu0 0.0
        %1026 = vmatpush1.msra.mxu0 0.0
        %1027 = vmatprep.subr.mxu0 0.0
        %1028 = vmatpush1.msra.mxu0 0.0
        %1029 = vmatprep.subr.mxu0 0.0
        %1030 = vmatpush1.msra.mxu0 0.0
        %1031 = vmatprep.subr.mxu0 0.0
        %1032 = vmatpush1.msra.mxu0 0.0
        %1033 = vmatprep.subr.mxu0 0.0
        %1034 = vmatpush1.msra.mxu0 0.0
        %1035 = vmatprep.subr.mxu0 0.0
        %1036 = vmatpush1.msra.mxu0 0.0
        %1037 = vmatprep.subr.mxu0 0.0
        %1038 = vmatpush1.msra.mxu0 0.0
        %1039 = vmatprep.subr.mxu0 0.0
        %1040 = vmatpush1.msra.mxu0 0.0
        %1041 = vmatprep.subr.mxu0 0.0
        %1042 = vmatpush1.msra.mxu0 0.0
        %1043 = vmatprep.subr.mxu0 0.0
        %1044 = vmatpush1.msra.mxu0 0.0
        %1045 = vmatprep.subr.mxu0 0.0
        %1046 = vmatpush1.msra.mxu0 0.0
        %1047 = vmatprep.subr.mxu0 0.0
        %1048 = vmatpush1.msra.mxu0 0.0
        %1049 = vmatprep.subr.mxu0 0.0
        %1050 = vmatpush1.msra.mxu0 0.0
        %1051 = vmatprep.subr.mxu0 0.0
        %1052 = vmatpush1.msra.mxu0 0.0
        %1053 = vmatprep.subr.mxu0 0.0
        %1054 = vmatpush1.msra.mxu0 0.0
        %1055 = vmatprep.mubr.f32.mxu0 0.0
        %1056 = vmatmul.mubr.f32.gmra.mrb[0].mxu0 %v860
        %v1057 = vpop.f32.mrb[0].mxu0
        %v1058 = vadd.f32 %v443, %v1057
        %v1059 = vpop.f32.mrb[0].mxu0
        %1060 = vdwg.mxu0
        %v1061 = vadd.f32 %v870, %v987
        %v1062 = vxor.u32 %v1061, 2147483648
        %v1063 = vmul.f32 %v1062, 1.442695
        %v1064 = vpow.pop %v1063
        %v1065 = vadd.f32 %v1064, 1.0
        %v1066 = vrcp.pop %v1065
        %v1067 = vmul.f32 1.0, %v1066
        %v1069 = vrot.slane %v870, 4
        %v1071 = vadd.f32 %v1069, %v989
        %v1072 = vxor.u32 %v1071, 2147483648
        %v1073 = vmul.f32 %v1072, 1.442695
        %v1074 = vpow.pop %v1073
        %v1075 = vadd.f32 %v1074, 1.0
        %v1076 = vrcp.pop %v1075
        %v1077 = vmul.f32 1.0, %v1076
        %v1078 = vmul.f32 %v1067, %v1058
        %v1079 = vadd.f32 %v871, %v1078
        %v1080 = vtanh.pop %v1079
        %v1081 = vsub.f32 %v860, %v1080
        %v1082 = vmul.f32 %v1077, %v1081
        %v1083 = vadd.f32 %v1080, %v1082
        %s1084 = sadd.s32 %s376, %s866
        %s1085 = scvt.s32.f32 %s1084
        %v1086 = vstv %s1085
        %vm1087 = vcmp.lt.f32.partialorder %v1086, %v369
        %v1088 = vsel %vm1087, 1, 0
        %v1089 = vcvt.s32.f32 %v1088
        %v1090 = vsub.f32 %v1083, %v860
        %1092 = vset.pattern.permute.xlu0 0
        %1093 = vperm.xlu0 %1092, %v1089
        %v1094 = vpop.permute.xlu0 %1093
        %v1096 = vmul.f32 %v1094, %v1090
        %v1097 = vadd.f32 %v860, %v1096
        %v1098 = vmul.f32 %v1094, %v1083
        %s1099 = smul.u32 %s866, 4
        %s1100 = scalar_lea.vmem %s339, %s1099 [#allocation8]
        %1101 = vst [vmem:[%s1100] sm:$0xf] %v1098
        %s1102 = smul.u32 %s372, 3
        %s1103 = sadd.s32 %s373, %s1102
        %s1104 = smul.u32 %s1103, 3
        %s1105 = smul.addr %s1104, 4
        %s1106 = scalar_lea.vmem %s297, %s1105 [#allocation3]
        %v1107 = vld [vmem:[%s1106] sm:$0xff]
        %v1108 = vld [vmem:[%s1106 + $0x8] sm:$0xf]
        %v1109 = vld [vmem:[%s306] sm:$0xff]
        %v1110 = vld [vmem:[%s306 + $0x8] sm:$0xff]
        %v1111 = vld [vmem:[%s306 + $0x10] sm:$0xff]
        %v1112 = vld [vmem:[%s306 + $0x18] sm:$0xff]
        %v1113 = vld [vmem:[%s306 + $0x20] sm:$0xff]
        %v1114 = vld [vmem:[%s306 + $0x28] sm:$0xff]
        %v1115 = vld [vmem:[%s306 + $0x30] sm:$0xff]
        %v1116 = vld [vmem:[%s306 + $0x38] sm:$0xff]
        %v1117 = vld [vmem:[%s306 + $0x40] sm:$0xff]
        %v1118 = vld [vmem:[%s306 + $0x48] sm:$0xff]
        %v1119 = vld [vmem:[%s306 + $0x50] sm:$0xff]
        %v1120 = vld [vmem:[%s306 + $0x58] sm:$0xff]
        %v1121 = vld [vmem:[%s306 + $0x60] sm:$0xff]
        %v1122 = vld [vmem:[%s306 + $0x68] sm:$0xff]
        %v1123 = vld [vmem:[%s306 + $0x70] sm:$0xff]
        %v1124 = vld [vmem:[%s306 + $0x78] sm:$0xff]
        %v1125 = vld [vmem:[%s306 + $0x80] sm:$0xff]
        %v1126 = vld [vmem:[%s306 + $0x88] sm:$0xff]
        %v1127 = vld [vmem:[%s306 + $0x90] sm:$0xff]
        %v1128 = vld [vmem:[%s306 + $0x98] sm:$0xff]
        %v1129 = vld [vmem:[%s306 + $0xa0] sm:$0xff]
        %v1130 = vld [vmem:[%s306 + $0xa8] sm:$0xff]
        %v1131 = vld [vmem:[%s306 + $0xb0] sm:$0xff]
        %v1132 = vld [vmem:[%s306 + $0xb8] sm:$0xff]
        %v1133 = vld [vmem:[%s306 + $0xc0] sm:$0xff]
        %v1134 = vld [vmem:[%s306 + $0xc8] sm:$0xff]
        %v1135 = vld [vmem:[%s306 + $0xd0] sm:$0xff]
        %v1136 = vld [vmem:[%s306 + $0xd8] sm:$0xff]
        %v1137 = vld [vmem:[%s306 + $0xe0] sm:$0xff]
        %v1138 = vld [vmem:[%s306 + $0xe8] sm:$0xff]
        %v1139 = vld [vmem:[%s306 + $0xf0] sm:$0xff]
        %v1140 = vld [vmem:[%s306 + $0xf8] sm:$0xff]
        %v1141 = vld [vmem:[%s306 + $0x100] sm:$0xff]
        %v1142 = vld [vmem:[%s306 + $0x108] sm:$0xff]
        %v1143 = vld [vmem:[%s306 + $0x110] sm:$0xff]
        %v1144 = vld [vmem:[%s306 + $0x118] sm:$0xff]
        %v1145 = vld [vmem:[%s306 + $0x120] sm:$0xff]
        %v1146 = vld [vmem:[%s306 + $0x128] sm:$0xff]
        %v1147 = vld [vmem:[%s306 + $0x130] sm:$0xff]
        %v1148 = vld [vmem:[%s306 + $0x138] sm:$0xff]
        %v1149 = vld [vmem:[%s306 + $0x140] sm:$0xff]
        %v1150 = vld [vmem:[%s306 + $0x148] sm:$0xff]
        %v1151 = vld [vmem:[%s306 + $0x150] sm:$0xff]
        %v1152 = vld [vmem:[%s306 + $0x158] sm:$0xff]
        %v1153 = vld [vmem:[%s306 + $0x160] sm:$0xff]
        %v1154 = vld [vmem:[%s306 + $0x168] sm:$0xff]
        %v1155 = vld [vmem:[%s306 + $0x170] sm:$0xff]
        %v1156 = vld [vmem:[%s306 + $0x178] sm:$0xff]
        %1157 = vmatprep.subr.mxu0 %v1110
        %1158 = vmatpush1.msra.mxu0 %v1109
        %1159 = vmatprep.subr.mxu0 %v1113
        %1160 = vmatpush1.msra.mxu0 %v1112
        %1161 = vmatprep.subr.mxu0 %v1116
        %1162 = vmatpush1.msra.mxu0 %v1115
        %1163 = vmatprep.subr.mxu0 %v1119
        %1164 = vmatpush1.msra.mxu0 %v1118
        %1165 = vmatprep.subr.mxu0 %v1122
        %1166 = vmatpush1.msra.mxu0 %v1121
        %1167 = vmatprep.subr.mxu0 %v1125
        %1168 = vmatpush1.msra.mxu0 %v1124
        %1169 = vmatprep.subr.mxu0 %v1128
        %1170 = vmatpush1.msra.mxu0 %v1127
        %1171 = vmatprep.subr.mxu0 %v1131
        %1172 = vmatpush1.msra.mxu0 %v1130
        %1173 = vmatprep.subr.mxu0 %v1134
        %1174 = vmatpush1.msra.mxu0 %v1133
        %1175 = vmatprep.subr.mxu0 %v1137
        %1176 = vmatpush1.msra.mxu0 %v1136
        %1177 = vmatprep.subr.mxu0 %v1140
        %1178 = vmatpush1.msra.mxu0 %v1139
        %1179 = vmatprep.subr.mxu0 %v1143
        %1180 = vmatpush1.msra.mxu0 %v1142
        %1181 = vmatprep.subr.mxu0 %v1146
        %1182 = vmatpush1.msra.mxu0 %v1145
        %1183 = vmatprep.subr.mxu0 %v1149
        %1184 = vmatpush1.msra.mxu0 %v1148
        %1185 = vmatprep.subr.mxu0 %v1152
        %1186 = vmatpush1.msra.mxu0 %v1151
        %1187 = vmatprep.subr.mxu0 %v1155
        %1188 = vmatpush1.msra.mxu0 %v1154
        %1189 = vmatprep.subr.mxu0 0.0
        %1190 = vmatpush1.msra.mxu0 0.0
        %1191 = vmatprep.subr.mxu0 0.0
        %1192 = vmatpush1.msra.mxu0 0.0
        %1193 = vmatprep.subr.mxu0 0.0
        %1194 = vmatpush1.msra.mxu0 0.0
        %1195 = vmatprep.subr.mxu0 0.0
        %1196 = vmatpush1.msra.mxu0 0.0
        %1197 = vmatprep.subr.mxu0 0.0
        %1198 = vmatpush1.msra.mxu0 0.0
        %1199 = vmatprep.subr.mxu0 0.0
        %1200 = vmatpush1.msra.mxu0 0.0
        %1201 = vmatprep.subr.mxu0 0.0
        %1202 = vmatpush1.msra.mxu0 0.0
        %1203 = vmatprep.subr.mxu0 0.0
        %1204 = vmatpush1.msra.mxu0 0.0
        %1205 = vmatprep.subr.mxu0 0.0
        %1206 = vmatpush1.msra.mxu0 0.0
        %1207 = vmatprep.subr.mxu0 0.0
        %1208 = vmatpush1.msra.mxu0 0.0
        %1209 = vmatprep.subr.mxu0 0.0
        %1210 = vmatpush1.msra.mxu0 0.0
        %1211 = vmatprep.subr.mxu0 0.0
        %1212 = vmatpush1.msra.mxu0 0.0
        %1213 = vmatprep.subr.mxu0 0.0
        %1214 = vmatpush1.msra.mxu0 0.0
        %1215 = vmatprep.subr.mxu0 0.0
        %1216 = vmatpush1.msra.mxu0 0.0
        %1217 = vmatprep.subr.mxu0 0.0
        %1218 = vmatpush1.msra.mxu0 0.0
        %1219 = vmatprep.subr.mxu0 0.0
        %1220 = vmatpush1.msra.mxu0 0.0
        %1221 = vmatprep.mubr.f32.mxu0 0.0
        %1222 = vmatmul.mubr.f32.gmra.mrb[0].mxu0 %v1097
        %v1223 = vpop.f32.mrb[0].mxu0
        %v1224 = vadd.f32 %v435, %v1223
        %v1225 = vpop.f32.mrb[0].mxu0
        %v1226 = vadd.f32 %v439, %v1225
        %1227 = vdwg.mxu0
        %1228 = vmatprep.subr.mxu0 0.0
        %1229 = vmatpush1.msra.mxu0 %v1111
        %1230 = vmatprep.subr.mxu0 0.0
        %1231 = vmatpush1.msra.mxu0 %v1114
        %1232 = vmatprep.subr.mxu0 0.0
        %1233 = vmatpush1.msra.mxu0 %v1117
        %1234 = vmatprep.subr.mxu0 0.0
        %1235 = vmatpush1.msra.mxu0 %v1120
        %1236 = vmatprep.subr.mxu0 0.0
        %1237 = vmatpush1.msra.mxu0 %v1123
        %1238 = vmatprep.subr.mxu0 0.0
        %1239 = vmatpush1.msra.mxu0 %v1126
        %1240 = vmatprep.subr.mxu0 0.0
        %1241 = vmatpush1.msra.mxu0 %v1129
        %1242 = vmatprep.subr.mxu0 0.0
        %1243 = vmatpush1.msra.mxu0 %v1132
        %1244 = vmatprep.subr.mxu0 0.0
        %1245 = vmatpush1.msra.mxu0 %v1135
        %1246 = vmatprep.subr.mxu0 0.0
        %1247 = vmatpush1.msra.mxu0 %v1138
        %1248 = vmatprep.subr.mxu0 0.0
        %1249 = vmatpush1.msra.mxu0 %v1141
        %1250 = vmatprep.subr.mxu0 0.0
        %1251 = vmatpush1.msra.mxu0 %v1144
        %1252 = vmatprep.subr.mxu0 0.0
        %1253 = vmatpush1.msra.mxu0 %v1147
        %1254 = vmatprep.subr.mxu0 0.0
        %1255 = vmatpush1.msra.mxu0 %v1150
        %1256 = vmatprep.subr.mxu0 0.0
        %1257 = vmatpush1.msra.mxu0 %v1153
        %1258 = vmatprep.subr.mxu0 0.0
        %1259 = vmatpush1.msra.mxu0 %v1156
        %1260 = vmatprep.subr.mxu0 0.0
        %1261 = vmatpush1.msra.mxu0 0.0
        %1262 = vmatprep.subr.mxu0 0.0
        %1263 = vmatpush1.msra.mxu0 0.0
        %1264 = vmatprep.subr.mxu0 0.0
        %1265 = vmatpush1.msra.mxu0 0.0
        %1266 = vmatprep.subr.mxu0 0.0
        %1267 = vmatpush1.msra.mxu0 0.0
        %1268 = vmatprep.subr.mxu0 0.0
        %1269 = vmatpush1.msra.mxu0 0.0
        %1270 = vmatprep.subr.mxu0 0.0
        %1271 = vmatpush1.msra.mxu0 0.0
        %1272 = vmatprep.subr.mxu0 0.0
        %1273 = vmatpush1.msra.mxu0 0.0
        %1274 = vmatprep.subr.mxu0 0.0
        %1275 = vmatpush1.msra.mxu0 0.0
        %1276 = vmatprep.subr.mxu0 0.0
        %1277 = vmatpush1.msra.mxu0 0.0
        %1278 = vmatprep.subr.mxu0 0.0
        %1279 = vmatpush1.msra.mxu0 0.0
        %1280 = vmatprep.subr.mxu0 0.0
        %1281 = vmatpush1.msra.mxu0 0.0
        %1282 = vmatprep.subr.mxu0 0.0
        %1283 = vmatpush1.msra.mxu0 0.0
        %1284 = vmatprep.subr.mxu0 0.0
        %1285 = vmatpush1.msra.mxu0 0.0
        %1286 = vmatprep.subr.mxu0 0.0
        %1287 = vmatpush1.msra.mxu0 0.0
        %1288 = vmatprep.subr.mxu0 0.0
        %1289 = vmatpush1.msra.mxu0 0.0
        %1290 = vmatprep.subr.mxu0 0.0
        %1291 = vmatpush1.msra.mxu0 0.0
        %1292 = vmatprep.mubr.f32.mxu0 0.0
        %1293 = vmatmul.mubr.f32.gmra.mrb[0].mxu0 %v1097
        %v1294 = vpop.f32.mrb[0].mxu0
        %v1295 = vadd.f32 %v443, %v1294
        %v1296 = vpop.f32.mrb[0].mxu0
        %1297 = vdwg.mxu0
        %v1298 = vadd.f32 %v1107, %v1224
        %v1299 = vxor.u32 %v1298, 2147483648
        %v1300 = vmul.f32 %v1299, 1.442695
        %v1301 = vpow.pop %v1300
        %v1302 = vadd.f32 %v1301, 1.0
        %v1303 = vrcp.pop %v1302
        %v1304 = vmul.f32 1.0, %v1303
        %v1306 = vrot.slane %v1107, 4
        %v1308 = vadd.f32 %v1306, %v1226
        %v1309 = vxor.u32 %v1308, 2147483648
        %v1310 = vmul.f32 %v1309, 1.442695
        %v1311 = vpow.pop %v1310
        %v1312 = vadd.f32 %v1311, 1.0
        %v1313 = vrcp.pop %v1312
        %v1314 = vmul.f32 1.0, %v1313
        %v1315 = vmul.f32 %v1304, %v1295
        %v1316 = vadd.f32 %v1108, %v1315
        %v1317 = vtanh.pop %v1316
        %v1318 = vsub.f32 %v1097, %v1317
        %v1319 = vmul.f32 %v1314, %v1318
        %v1320 = vadd.f32 %v1317, %v1319
        %s1321 = sadd.s32 %s376, %s1103
        %s1322 = scvt.s32.f32 %s1321
        %v1323 = vstv %s1322
        %vm1324 = vcmp.lt.f32.partialorder %v1323, %v369
        %v1325 = vsel %vm1324, 1, 0
        %v1326 = vcvt.s32.f32 %v1325
        %v1327 = vsub.f32 %v1320, %v1097
        %1329 = vset.pattern.permute.xlu0 0
        %1330 = vperm.xlu0 %1329, %v1326
        %v1331 = vpop.permute.xlu0 %1330
        %v1333 = vmul.f32 %v1331, %v1327
        %v1334 = vadd.f32 %v1097, %v1333
        %v1335 = vmul.f32 %v1331, %v1320
        %s1336 = smul.u32 %s1103, 4
        %s1337 = scalar_lea.vmem %s339, %s1336 [#allocation8]
        %1338 = vst [vmem:[%s1337] sm:$0xf] %v1335
        %1339 = vst [vmem:[#allocation2] sm:$0xf] %v1334
        %1340 = vst [vmem:[%s346] sm:$0xf] %v1334
        %s1341 = sand.u32 %s168, 1
        %s1342 = scalar_lea.sflag [#allocation5], %s1341
        %s1343 = sand.u32 %s168, 1
        %s1344 = smul.addr %s1343, 16
        %s1345 = scalar_lea.vmem [#allocation8], %s1344
        %s1346 = sand.u32 %s194, 1
        %s1347 = scalar_lea.sflag [#allocation10], %s1346
        %s1348 = sand.u32 %s194, 1
        %s1349 = smul.addr %s1348, 4
        %s1350 = scalar_lea.vmem [#allocation9], %s1349
        // Predicated region
        $region49: #{tpu_custom_call.1} parent=35 // pred_check
          %p1351 = pneg %p178
        $region50: #{tpu_custom_call.1} parent=35 // pred_check_branch
          %1353 = sbr.rel (%p1351) target = $region52
        $region51: #{tpu_custom_call.1} parent=35 // pred_region
          %s1354 = smul.u32 %s33, 2
          %s1355 = ssub.s32 1, %s1354
          %s1356 = smul.u32 %s1355, %s34
          %s1357 = sadd.s32 %s33, %s1356
          %s1358 = smul.u32 4, %s1357
          %s1360 = ssub.s32 256, 256
          %1361 = vsyncadd %s1342, %s1360
          %s1362 = smul.addr %s1358, 2
          %s1363 = sadd.s32 %s33, %s1362
          %s1364 = smul.addr %s1363, 64
          %s1365 = scalar_lea.hbm %s4, %s1364
          %s1366 = sshll.u32 %s1345, 4
          %s1367 = int_to_ptr.vmem [resolvable:$true] %s1366
          %1372 = dma.vmem_to_hbm [thread:$0]  %s1367, 256, %s1365, %s1342, 64, 128, 4
        $region52: #{tpu_custom_call.1} parent=35 // pred_fallthru
          _
        // Predicated region
        $region53: #{tpu_custom_call.1} parent=35 // pred_check
          %p1373 = pneg %p204
        $region54: #{tpu_custom_call.1} parent=35 // pred_check_branch
          %1375 = sbr.rel (%p1373) target = $region56
        $region55: #{tpu_custom_call.1} parent=35 // pred_region
          %s1377 = ssub.s32 64, 64
          %1378 = vsyncadd %s1347, %s1377
          %s1379 = smul.addr %s33, 64
          %s1380 = scalar_lea.hbm %s5, %s1379
          %s1382 = sshll.u32 %s1350, 4
          %s1383 = int_to_ptr.vmem [resolvable:$true] %s1382
          %1385 = dma.vmem_to_hbm [thread:$0]  %s1383, 64, %s1380, %s1347
        $region56: #{tpu_custom_call.1} parent=35 // pred_fallthru
          _
      $region36: #{tpu_custom_call.1} parent=5 // pred_fallthru
        _
      %p1386 = scmp.le.s32.totalorder 2, %s24
      // Predicated region
      $region57: #{tpu_custom_call.1} parent=5 // pred_check
        %p1387 = pneg %p1386
      $region58: #{tpu_custom_call.1} parent=5 // pred_check_branch
        %1389 = sbr.rel (%p1387) target = $region60
      $region59: #{tpu_custom_call.1} parent=5 // pred_region
        %s1390 = ssub.s32 %s24, 2
        // Predicated region
        $region61: #{tpu_custom_call.1} parent=59 // pred_check
          %p1391 = pneg %p184
        $region62: #{tpu_custom_call.1} parent=59 // pred_check_branch
          %1393 = sbr.rel (%p1391) target = $region64
        $region63: #{tpu_custom_call.1} parent=59 // pred_region
          %s1394 = sand.u32 %s169, 1
          %s1395 = scalar_lea.sflag [#allocation5], %s1394
          %s1396 = sand.u32 %s169, 1
          %s1397 = smul.addr %s1396, 16
          %s1398 = scalar_lea.vmem [#allocation8], %s1397
          %1399 = dma.done %s1395, 256
        $region64: #{tpu_custom_call.1} parent=59 // pred_fallthru
          _
        // Predicated region
        $region65: #{tpu_custom_call.1} parent=59 // pred_check
          %p1400 = pneg %p210
        $region66: #{tpu_custom_call.1} parent=59 // pred_check_branch
          %1402 = sbr.rel (%p1400) target = $region68
        $region67: #{tpu_custom_call.1} parent=59 // pred_region
          %s1403 = sand.u32 %s195, 1
          %s1404 = scalar_lea.sflag [#allocation10], %s1403
          %s1405 = sand.u32 %s195, 1
          %s1406 = smul.addr %s1405, 4
          %s1407 = scalar_lea.vmem [#allocation9], %s1406
          %1408 = dma.done %s1404, 64
        $region68: #{tpu_custom_call.1} parent=59 // pred_fallthru
          _
      $region60: #{tpu_custom_call.1} parent=5 // pred_fallthru
        _
    $region6: #{tpu_custom_call.1} parent=1 // loop_footer
      %s28 = sadd.s32 1, %s24
    $region7: #{tpu_custom_call.1} parent=1 // loop_footer_branch
      %23 = sbr.rel target = $region3
    $region8: #{tpu_custom_call.1} parent=1 // loop_exit
      _
    %1409 = vsyncpa [#allocation4], 1
    %s1410 = scalar_lea.sflag [#allocation4], 1
    %1411 = vsyncpa %s1410, 1
    %1412 = vsyncpa [#allocation7], 1
    %s1413 = scalar_lea.sflag [#allocation7], 1
    %1414 = vsyncpa %s1413, 1
    %1415 = vsyncpa [#allocation5], 1
    %s1416 = scalar_lea.sflag [#allocation5], 1
    %1417 = vsyncpa %s1416, 1
    %1418 = vsyncpa [#allocation10], 1
    %s1419 = scalar_lea.sflag [#allocation10], 1
    %1420 = vsyncpa %s1419, 1

</llo_original>
